<compile_context>
chip_gen: v7x
topology: tpu7x:2x2x1
jax: 0.10.0
libtpu: 0.0.40
codegen_flags: <defaults>
</compile_context>

<pallas_src>
import math
from functools import partial

import jax
import jax.numpy as jnp
from jax.experimental import pallas as pl
from jax.experimental.pallas import tpu as pltpu

LANE = 128            # lane width / padded feature+hidden width
SIG_OFF = LANE // 2   # lane offset of the sigma head inside the fused head block (MUST stay LANE//2)
Z_LANE = LANE - 2     # lane 126 of the packed state carries the per-state N(0,1) sample
ONES_LANE = LANE - 1  # lane 127 carries 1.0 (homogeneous bias lane)
TILE_M = 256          # batch rows per grid step (v6e/v7x MXU geometry; 128 is enough on v5e)
NEG_HALF_LOG_2PI = -0.5 * math.log(2.0 * math.pi)


# ----------------------------- Pallas kernel ------------------------------- #
def action_module_kernel(x_ref, w_ref, out_ref):
    # x_ref  : (TILE_M, 128) f32  lanes [0:F)=state, lane 126=z, lane 127=1.0 (bias lane)
    # w_ref  : (512, 128)   bf16  packed [W1 | W2 | W3 | W_heads] (bias folded into row 127)
    # out_ref: (TILE_M, 512) f32  lanes [0:128)=mu [128:256)=sigma [256:384)=action [384:512)=log_prob
    x = x_ref[...]

    def fc(h, blk):
        w = w_ref[blk * LANE:(blk + 1) * LANE, :]
        return jnp.dot(h.astype(jnp.bfloat16), w, preferred_element_type=jnp.float32)

    # fc1/fc2/fc3 with ReLU; bias folded into the matmul via the ones-lane.
    h1 = jnp.maximum(fc(x, 0), 0.0)
    h2 = jnp.maximum(fc(h1, 1), 0.0)
    h3 = jnp.maximum(fc(h2, 2), 0.0)

    # Fused mu/sigma head: mu pre-act at lanes [0:A), sigma pre-act at lanes [64:64+A).
    pre = fc(h3, 3)

    mu = jnp.tanh(pre)                        # valid at lanes [0:A)
    sig = jax.nn.sigmoid(pre + 1e-5)          # valid at lanes [64:64+A); eps added pre-sigmoid
    # Half-width rotation aligns sigma with mu (lane 64+i -> lane i).  Direction-agnostic
    # ONLY because SIG_OFF == LANE // 2 (guarded by an assert in pack_weights).
    sig = pltpu.roll(sig, SIG_OFF, 1)

    z = x[:, Z_LANE:Z_LANE + 1]               # (TILE_M, 1) per-state N(0,1) sample
    action = jnp.clip(mu + sig * z, -1.0, 1.0)

    # PyTorch quirk kept: log_prob(action[0]) broadcasts each state's FIRST action component.
    a0 = action[:, 0:1]
    t = (a0 - mu) / sig                       # exact divide (approx reciprocal removed)
    log_prob = -0.5 * t * t - jnp.log(sig) + NEG_HALF_LOG_2PI

    # Four full-128-lane stores into a single lane-dense output block.
    out_ref[:, 0 * LANE:1 * LANE] = mu
    out_ref[:, 1 * LANE:2 * LANE] = sig
    out_ref[:, 2 * LANE:3 * LANE] = action
    out_ref[:, 3 * LANE:4 * LANE] = log_prob


# --------------------------- host-side packing ------------------------------ #
def pack_weights(params):
    """Pack all weights+biases into one (512, 128) lane-dense bf16 slab (done once)."""
    f_in = params["w1_t"].shape[0]
    hid = params["b1"].shape[0]
    n_action = params["bmu"].shape[0]
    assert SIG_OFF == LANE // 2                 # roll-by-half trick requires this
    assert f_in <= Z_LANE and hid <= Z_LANE     # keep lanes 126/127 free for z / ones
    assert n_action <= SIG_OFF

    def fc_block(w_t, b):
        blk = jnp.zeros((LANE, LANE), jnp.float32)
        blk = blk.at[: w_t.shape[0], : w_t.shape[1]].set(w_t.astype(jnp.float32))
        blk = blk.at[ONES_LANE, : b.shape[0]].set(b.astype(jnp.float32))
        blk = blk.at[ONES_LANE, ONES_LANE].set(1.0)   # propagate the ones-lane
        return blk

    head = jnp.zeros((LANE, LANE), jnp.float32)
    head = head.at[:hid, 0:n_action].set(params["wmu_t"].astype(jnp.float32))
    head = head.at[:hid, SIG_OFF:SIG_OFF + n_action].set(params["wsig_t"].astype(jnp.float32))
    head = head.at[ONES_LANE, 0:n_action].set(params["bmu"].astype(jnp.float32))
    head = head.at[ONES_LANE, SIG_OFF:SIG_OFF + n_action].set(params["bsig"].astype(jnp.float32))

    slab = jnp.concatenate(
        [fc_block(params["w1_t"], params["b1"]),
         fc_block(params["w2_t"], params["b2"]),
         fc_block(params["w3_t"], params["b3"]),
         head],
        axis=0)                                       # (512, 128)
    return slab.astype(jnp.bfloat16)                  # 128 KiB, VMEM-resident across the grid


# ------------------------------- wrapper ------------------------------------ #
@partial(jax.jit, static_argnames=("n_action", "tile_m"))
def action_module_forward(extract_states, z, w_slab, *, n_action, tile_m=TILE_M):
    """extract_states: (B, F) f32; z: (B,) N(0,1) samples; w_slab: (512, 128) bf16 packed."""
    states = jnp.asarray(extract_states, jnp.float32)
    b, f_in = states.shape
    b_pad = pl.cdiv(b, tile_m) * tile_m

    # Pack states + per-state z + ones-lane into one lane-dense (B_pad, 128) block.
    x = jnp.zeros((b_pad, LANE), jnp.float32)
    x = x.at[:b, :f_in].set(states)
    x = x.at[:b, Z_LANE].set(jnp.asarray(z, jnp.float32))
    x = x.at[:, ONES_LANE].set(1.0)

    out = pl.pallas_call(
        action_module_kernel,
        out_shape=jax.ShapeDtypeStruct((b_pad, 4 * LANE), jnp.float32),
        grid_spec=pltpu.PrefetchScalarGridSpec(
            num_scalar_prefetch=0,
            grid=(b_pad // tile_m,),
            in_specs=[
                pl.BlockSpec((tile_m, LANE), lambda i: (i, 0)),     # states: new block per step
                pl.BlockSpec((4 * LANE, LANE), lambda i: (0, 0)),   # weights: constant -> resident
            ],
            out_specs=pl.BlockSpec((tile_m, 4 * LANE), lambda i: (i, 0)),
        ),
        compiler_params=pltpu.CompilerParams(
            dimension_semantics=("parallel",)),        # shards the batch axis across TCs on v7x
    )(x, w_slab)

    mu = out[:b, 0:n_action]
    sigma = out[:b, LANE:LANE + n_action]
    action = out[:b, 2 * LANE:2 * LANE + n_action]
    log_prob = out[:b, 3 * LANE:3 * LANE + n_action]
    return mu, sigma, action, log_prob


# ------------------------- deterministic parameter init --------------------- #
def _linear_init(key, fan_in, fan_out):
    """PyTorch-style Linear init: U(-1/sqrt(fan_in), 1/sqrt(fan_in))."""
    kw, kb = jax.random.split(key)
    bound = 1.0 / math.sqrt(fan_in)
    w = jax.random.uniform(kw, (fan_out, fan_in), jnp.float32, -bound, bound)
    b = jax.random.uniform(kb, (fan_out,), jnp.float32, -bound, bound)
    return w, b


def _normed_linear_init(key, fan_in, fan_out, scale=0.1):
    w, b = _linear_init(key, fan_in, fan_out)
    norm = jnp.linalg.norm(w, axis=1, keepdims=True)   # per-output-row L2 norm
    w = w * (scale / norm)
    return w, b


def make_params(key, feature_extractor, last_hidden, n_action):
    k1, k2, k3, k4, k5 = jax.random.split(key, 5)
    w1, b1 = _linear_init(k1, feature_extractor, last_hidden)
    w2, b2 = _linear_init(k2, last_hidden, last_hidden)
    w3, b3 = _linear_init(k3, last_hidden, last_hidden)
    wmu, bmu = _normed_linear_init(k4, last_hidden, n_action, scale=0.1)
    wsig, bsig = _normed_linear_init(k5, last_hidden, n_action, scale=0.1)
    return {
        "w1_t": w1.T, "b1": b1,
        "w2_t": w2.T, "b2": b2,
        "w3_t": w3.T, "b3": b3,
        "wmu_t": wmu.T, "bmu": bmu,
        "wsig_t": wsig.T, "bsig": bsig,
    }


# ------------------------------ reference (plain JAX) ------------------------ #
def reference_forward(states, params, z):
    """Plain-JAX mirror of the PyTorch forward (continuous branch), applied row-wise.

    Mirrors the kernel's deliberate bf16 weight/activation storage so the comparison
    validates the kernel implementation (packing, bias fold, roll, log_prob math);
    the residual tolerance only covers rare 1-ulp bf16 rounding differences at the
    cast boundaries, not kernel math error (1/sigma is an exact divide)."""
    f32, bf16 = jnp.float32, jnp.bfloat16

    def lin(h, w_t, b):
        return (jnp.dot(h.astype(bf16), w_t.astype(bf16), preferred_element_type=f32)
                + b.astype(bf16).astype(f32))

    h1 = jnp.maximum(lin(states, params["w1_t"], params["b1"]), 0.0)
    h2 = jnp.maximum(lin(h1, params["w2_t"], params["b2"]), 0.0)
    h3 = jnp.maximum(lin(h2, params["w3_t"], params["b3"]), 0.0)
    mu = jnp.tanh(lin(h3, params["wmu_t"], params["bmu"]))
    sigma = jax.nn.sigmoid(lin(h3, params["wsig_t"], params["bsig"]) + 1e-5)
    zc = z.reshape(-1, 1).astype(f32)
    action = jnp.clip(mu + sigma * zc, -1.0, 1.0)
    a0 = action[:, 0:1]                       # PyTorch: log_prob(action[0]) per state
    log_prob = (-((a0 - mu) ** 2) / (2.0 * sigma ** 2)
                - jnp.log(sigma) - 0.5 * math.log(2.0 * math.pi))
    return mu, sigma, action, log_prob


if __name__ == "__main__":
    # args: n_hidden=32, n_rnn_layers=1, rnn_directions=1, n_action=4, discrete_actions=False
    n_hidden, n_layers, directions, n_action = 32, 1, 1, 4
    feature_extractor = n_hidden * n_layers * directions        # 32
    last_hidden = feature_extractor * 2                         # 64
    batch = 512                                                  # rollout-style batch of states

    key = jax.random.PRNGKey(0)
    k_param, k_x, k_z = jax.random.split(key, 3)

    params = make_params(k_param, feature_extractor, last_hidden, n_action)
    w_slab = pack_weights(params)                                # packed ONCE (bf16, 128 KiB)

    states = jax.random.normal(k_x, (batch, feature_extractor), jnp.float32)
    z = jax.random.normal(k_z, (batch,), jnp.float32)            # one N(0,1) sample per state

    outs = action_module_forward(states, z, w_slab, n_action=n_action)
    outs = jax.block_until_ready(outs)

    refs = reference_forward(states, params, z)
    names = ("mu", "sigma", "action", "log_prob")
    # Tolerance reflects the intentional bf16 weight/activation storage (rare 1-ulp bf16
    # rounding flips between folded-bias and explicit-bias formulations), not kernel error.
    tols = (2e-3, 2e-3, 2e-3, 5e-3)
    for name, o, r, tol in zip(names, outs, refs, tols):
        assert o.shape == (batch, n_action), (name, o.shape)
        assert bool(jnp.allclose(o, r, atol=tol, rtol=tol)), (
            name, float(jnp.max(jnp.abs(o - r))))

    print("KERNEL_OK")
</pallas_src>

<mosaic_0001>
module attributes {stable_mosaic.version = 11 : i64} {
  func.func @action_module_kernel(%arg0: i32, %arg1: memref<256x128xf32, #tpu.memory_space<vmem>>, %arg2: memref<512x128xbf16, #tpu.memory_space<vmem>>, %arg3: memref<256x512xf32, #tpu.memory_space<vmem>>) attributes {dimension_semantics = [#tpu.dimension_semantics<parallel>], iteration_bounds = array<i64: 2>, scalar_prefetch = 0 : i64, scratch_operands = 0 : i64, tpu.core_type = #tpu.core_type<tc>, window_params = [{transform_indices = @transform_0, window_bounds = array<i64: 256, 128>}, {pipeline_mode = #tpu.pipeline_mode<synchronous>, transform_indices = @transform_1, window_bounds = array<i64: 512, 128>}, {transform_indices = @transform_2, window_bounds = array<i64: 256, 512>}]} {
    %c0 = arith.constant 0 : index
    %c0_0 = arith.constant 0 : index
    %0 = vector.load %arg1[%c0, %c0_0] : memref<256x128xf32, #tpu.memory_space<vmem>>, vector<256x128xf32>
    %c0_1 = arith.constant 0 : index
    %c0_2 = arith.constant 0 : index
    %1 = vector.load %arg2[%c0_1, %c0_2] : memref<512x128xbf16, #tpu.memory_space<vmem>>, vector<128x128xbf16>
    %2 = arith.truncf %0 : vector<256x128xf32> to vector<256x128xbf16>
    %cst = arith.constant dense<0.000000e+00> : vector<256x128xf32>
    %3 = tpu.matmul %2, %1, %cst {dimension_numbers = #tpu.dot_dimension_numbers<[1], [0], [0], [1], [0, 0, 1, 1], [], []>} : vector<256x128xbf16>, vector<128x128xbf16>, vector<256x128xf32> -> vector<256x128xf32>
    %cst_3 = arith.constant 0.000000e+00 : f32
    %4 = vector.broadcast %cst_3 : f32 to vector<256x128xf32>
    %5 = arith.maximumf %3, %4 : vector<256x128xf32>
    %c128 = arith.constant 128 : index
    %c0_4 = arith.constant 0 : index
    %6 = vector.load %arg2[%c128, %c0_4] : memref<512x128xbf16, #tpu.memory_space<vmem>>, vector<128x128xbf16>
    %7 = arith.truncf %5 : vector<256x128xf32> to vector<256x128xbf16>
    %cst_5 = arith.constant dense<0.000000e+00> : vector<256x128xf32>
    %8 = tpu.matmul %7, %6, %cst_5 {dimension_numbers = #tpu.dot_dimension_numbers<[1], [0], [0], [1], [0, 0, 1, 1], [], []>} : vector<256x128xbf16>, vector<128x128xbf16>, vector<256x128xf32> -> vector<256x128xf32>
    %cst_6 = arith.constant 0.000000e+00 : f32
    %9 = vector.broadcast %cst_6 : f32 to vector<256x128xf32>
    %10 = arith.maximumf %8, %9 : vector<256x128xf32>
    %c256 = arith.constant 256 : index
    %c0_7 = arith.constant 0 : index
    %11 = vector.load %arg2[%c256, %c0_7] : memref<512x128xbf16, #tpu.memory_space<vmem>>, vector<128x128xbf16>
    %12 = arith.truncf %10 : vector<256x128xf32> to vector<256x128xbf16>
    %cst_8 = arith.constant dense<0.000000e+00> : vector<256x128xf32>
    %13 = tpu.matmul %12, %11, %cst_8 {dimension_numbers = #tpu.dot_dimension_numbers<[1], [0], [0], [1], [0, 0, 1, 1], [], []>} : vector<256x128xbf16>, vector<128x128xbf16>, vector<256x128xf32> -> vector<256x128xf32>
    %cst_9 = arith.constant 0.000000e+00 : f32
    %14 = vector.broadcast %cst_9 : f32 to vector<256x128xf32>
    %15 = arith.maximumf %13, %14 : vector<256x128xf32>
    %c384 = arith.constant 384 : index
    %c0_10 = arith.constant 0 : index
    %16 = vector.load %arg2[%c384, %c0_10] : memref<512x128xbf16, #tpu.memory_space<vmem>>, vector<128x128xbf16>
    %17 = arith.truncf %15 : vector<256x128xf32> to vector<256x128xbf16>
    %cst_11 = arith.constant dense<0.000000e+00> : vector<256x128xf32>
    %18 = tpu.matmul %17, %16, %cst_11 {dimension_numbers = #tpu.dot_dimension_numbers<[1], [0], [0], [1], [0, 0, 1, 1], [], []>} : vector<256x128xbf16>, vector<128x128xbf16>, vector<256x128xf32> -> vector<256x128xf32>
    %19 = math.tanh %18 : vector<256x128xf32>
    %cst_12 = arith.constant 9.99999974E-6 : f32
    %20 = vector.broadcast %cst_12 : f32 to vector<256x128xf32>
    %21 = arith.addf %18, %20 : vector<256x128xf32>
    %22 = arith.negf %21 : vector<256x128xf32>
    %23 = math.exp %22 : vector<256x128xf32>
    %cst_13 = arith.constant 1.000000e+00 : f32
    %24 = vector.broadcast %cst_13 : f32 to vector<256x128xf32>
    %25 = arith.addf %24, %23 : vector<256x128xf32>
    %26 = arith.divf %24, %25 : vector<256x128xf32>
    %c64_i32 = arith.constant 64 : i32
    %27 = tpu.dynamic_rotate %26 by %c64_i32 dim 1 : vector<256x128xf32>, i32 -> vector<256x128xf32>
    %28 = vector.extract_strided_slice %0 {offsets = [0, 126], sizes = [256, 1], strides = [1, 1]} : vector<256x128xf32> to vector<256x1xf32>
    %29 = vector.broadcast %28 : vector<256x1xf32> to vector<256x128xf32>
    %30 = arith.mulf %27, %29 : vector<256x128xf32>
    %31 = arith.addf %19, %30 : vector<256x128xf32>
    %cst_14 = arith.constant -1.000000e+00 : f32
    %cst_15 = arith.constant 1.000000e+00 : f32
    %32 = vector.broadcast %cst_14 : f32 to vector<256x128xf32>
    %33 = arith.maximumf %32, %31 : vector<256x128xf32>
    %34 = vector.broadcast %cst_15 : f32 to vector<256x128xf32>
    %35 = arith.minimumf %34, %33 : vector<256x128xf32>
    %36 = vector.extract_strided_slice %35 {offsets = [0, 0], sizes = [256, 1], strides = [1, 1]} : vector<256x128xf32> to vector<256x1xf32>
    %37 = vector.broadcast %36 : vector<256x1xf32> to vector<256x128xf32>
    %38 = arith.subf %37, %19 : vector<256x128xf32>
    %39 = arith.divf %38, %27 : vector<256x128xf32>
    %cst_16 = arith.constant -5.000000e-01 : f32
    %40 = vector.broadcast %cst_16 : f32 to vector<256x128xf32>
    %41 = arith.mulf %40, %39 : vector<256x128xf32>
    %42 = arith.mulf %41, %39 : vector<256x128xf32>
    %43 = math.log %27 : vector<256x128xf32>
    %44 = arith.subf %42, %43 : vector<256x128xf32>
    %cst_17 = arith.constant -0.918938517 : f32
    %45 = vector.broadcast %cst_17 : f32 to vector<256x128xf32>
    %46 = arith.addf %44, %45 : vector<256x128xf32>
    %c0_18 = arith.constant 0 : index
    %c0_19 = arith.constant 0 : index
    %47 = vector.load %arg3[%c0_18, %c0_19] : memref<256x512xf32, #tpu.memory_space<vmem>>, vector<256x128xf32>
    tpu.vector_store %arg3[%c0_18, %c0_19], %19 {strides = array<i32>} : memref<256x512xf32, #tpu.memory_space<vmem>>, vector<256x128xf32>,
    %c0_20 = arith.constant 0 : index
    %c128_21 = arith.constant 128 : index
    %48 = vector.load %arg3[%c0_20, %c128_21] : memref<256x512xf32, #tpu.memory_space<vmem>>, vector<256x128xf32>
    tpu.vector_store %arg3[%c0_20, %c128_21], %27 {strides = array<i32>} : memref<256x512xf32, #tpu.memory_space<vmem>>, vector<256x128xf32>,
    %c0_22 = arith.constant 0 : index
    %c256_23 = arith.constant 256 : index
    %49 = vector.load %arg3[%c0_22, %c256_23] : memref<256x512xf32, #tpu.memory_space<vmem>>, vector<256x128xf32>
    tpu.vector_store %arg3[%c0_22, %c256_23], %35 {strides = array<i32>} : memref<256x512xf32, #tpu.memory_space<vmem>>, vector<256x128xf32>,
    %c0_24 = arith.constant 0 : index
    %c384_25 = arith.constant 384 : index
    %50 = vector.load %arg3[%c0_24, %c384_25] : memref<256x512xf32, #tpu.memory_space<vmem>>, vector<256x128xf32>
    tpu.vector_store %arg3[%c0_24, %c384_25], %46 {strides = array<i32>} : memref<256x512xf32, #tpu.memory_space<vmem>>, vector<256x128xf32>,
    return
  }
  func.func @transform_0(%arg0: i32) -> (i32, i32) {
    %c0_i32 = arith.constant 0 : i32
    %c0_i32_0 = arith.constant 0 : i32
    return %arg0, %c0_i32 : i32, i32
  }
  func.func @transform_1(%arg0: i32) -> (i32, i32) {
    %c0_i32 = arith.constant 0 : i32
    %c0_i32_0 = arith.constant 0 : i32
    %c0_i32_1 = arith.constant 0 : i32
    return %c0_i32, %c0_i32_0 : i32, i32
  }
  func.func @transform_2(%arg0: i32) -> (i32, i32) {
    %c0_i32 = arith.constant 0 : i32
    %c0_i32_0 = arith.constant 0 : i32
    return %arg0, %c0_i32 : i32, i32
  }
}

</mosaic_0001>

<llo_original>
// kernel: action_module_forward.1
$region0: #{action_module_forward.1}
  #allocation0 [shape = 'u32[]', space=smem, size = 0x4, offset = 0x4, fixed_abs, tag = 'smem constant byte address 0x4 - core index']
  #allocation1 [shape = 'u32[144,128]{1,0:T(1,128)}', space=vmem, size = 0x12000, scoped, tag = 'internal scratch']
  %s0 = inlined_call_operand.vmem [shape: f32[512,128], index: 0, kind: input, shape index: {}]
  %s1 = inlined_call_operand.vmem [shape: bf16[512,128], index: 1, kind: input, shape index: {}]
  %s2 = inlined_call_operand.vmem [shape: f32[512,512], index: 2, kind: output, shape index: {}]
  %s3 = sld [smem:[#allocation0]]
  $region41: #{action_module_forward.1} parent=0
    _
  %s5 = ssub.s32 1, %s3
  %s6 = scalar_select 0, %s5, %s3
  loop: start=0, step=1, limit=4
  $region2: #{action_module_forward.1} parent=0 // loop_pre_header
    _
  $region3: #{action_module_forward.1} parent=0 // loop_header
    %s8 = sphi 0, %s12
    %p9 = scmp.ge.s32.totalorder %s8, 4
    %s18 = sphi 0, %s20
    %s21 = sphi 0, %s18
    %s22 = sphi 0, %s21
    %s38 = sphi 0, %s22
    %s42 = sphi 0, %s42
    %s44 = sphi 0, %s42
    %s45 = sphi 0, %s44
    %s59 = sphi 0, %s45
    %s65 = sphi 0, %s67
    %s68 = sphi 0, %s65
    %s69 = sphi 0, %s68
    %s85 = sphi 0, %s69
  $region4: #{action_module_forward.1} parent=0 // loop_header_branch
    %11 = sbr.rel (%p9) target = $region8
  $region5: #{action_module_forward.1} parent=0 // loop_body
    %s13 = ssub.s32 %s8, 1
    %s14 = ssub.s32 %s8, 2
    %s15 = sadd.s32 %s8, 1
    %s16 = ssub.s32 %s8, %s15
    %p17 = scmp.eq.s32.totalorder %s16, 0
    %s19 = sadd.s32 %s18, 1
    %s20 = scalar_select %p17, %s18, %s19
    %p23 = pneg %p17
    %p24 = scmp.eq.s32.totalorder %s8, 1
    %p25 = por %p23, %p24
    %p26 = scmp.ne.s32.totalorder %s18, %s21
    %p27 = scmp.eq.s32.totalorder %s8, 0
    %p28 = por %p26, %p27
    %p29 = scmp.ne.s32.totalorder %s18, %s21
    %p30 = scmp.eq.s32.totalorder %s13, 1
    %p31 = por %p29, %p30
    %p32 = scmp.ne.s32.totalorder %s21, %s22
    %p33 = scmp.eq.s32.totalorder %s13, 0
    %p34 = por %p32, %p33
    %p35 = scmp.ne.s32.totalorder %s21, %s22
    %p36 = scmp.eq.s32.totalorder %s14, 1
    %p37 = por %p35, %p36
    %p39 = scmp.ne.s32.totalorder %s22, %s38
    %p40 = scmp.eq.s32.totalorder %s14, 0
    %p41 = por %p39, %p40
    %s43 = sadd.s32 %s42, 1
    %p46 = scmp.eq.s32.totalorder %s8, 1
    %p47 = scmp.ne.s32.totalorder %s42, %s44
    %p48 = scmp.eq.s32.totalorder %s8, 0
    %p49 = por %p47, %p48
    %p50 = scmp.ne.s32.totalorder %s42, %s44
    %p51 = scmp.eq.s32.totalorder %s13, 1
    %p52 = por %p50, %p51
    %p53 = scmp.ne.s32.totalorder %s44, %s45
    %p54 = scmp.eq.s32.totalorder %s13, 0
    %p55 = por %p53, %p54
    %p56 = scmp.ne.s32.totalorder %s44, %s45
    %p57 = scmp.eq.s32.totalorder %s14, 1
    %p58 = por %p56, %p57
    %p60 = scmp.ne.s32.totalorder %s45, %s59
    %p61 = scmp.eq.s32.totalorder %s14, 0
    %p62 = por %p60, %p61
    %s63 = ssub.s32 %s8, %s15
    %p64 = scmp.eq.s32.totalorder %s63, 0
    %s66 = sadd.s32 %s65, 1
    %s67 = scalar_select %p64, %s65, %s66
    %p70 = pneg %p64
    %p71 = scmp.eq.s32.totalorder %s8, 1
    %p72 = por %p70, %p71
    %p73 = scmp.ne.s32.totalorder %s65, %s68
    %p74 = scmp.eq.s32.totalorder %s8, 0
    %p75 = por %p73, %p74
    %p76 = scmp.ne.s32.totalorder %s65, %s68
    %p77 = scmp.eq.s32.totalorder %s13, 1
    %p78 = por %p76, %p77
    %p79 = scmp.ne.s32.totalorder %s68, %s69
    %p80 = scmp.eq.s32.totalorder %s13, 0
    %p81 = por %p79, %p80
    %p82 = scmp.ne.s32.totalorder %s68, %s69
    %p83 = scmp.eq.s32.totalorder %s14, 1
    %p84 = por %p82, %p83
    %p86 = scmp.ne.s32.totalorder %s69, %s85
    %p87 = scmp.eq.s32.totalorder %s14, 0
    %p88 = por %p86, %p87
    %p89 = scmp.le.s32.totalorder 1, %s8
    %p90 = scmp.lt.s32.totalorder %s8, 3
    %p91 = pnand %p89, %p90
    %p92 = pneg %p91
    // Predicated region
    $region9: #{action_module_forward.1} parent=5 // pred_check
      _
    $region10: #{action_module_forward.1} parent=5 // pred_check_branch
      %94 = sbr.rel (%p91) target = $region12
    $region11: #{action_module_forward.1} parent=5 // pred_region
      %s95 = ssub.s32 %s8, 1
      // Predicated region
      $region13: #{action_module_forward.1} parent=11 // pred_check
        %p96 = pneg %p55
      $region14: #{action_module_forward.1} parent=11 // pred_check_branch
        %98 = sbr.rel (%p96) target = $region16
      $region15: #{action_module_forward.1} parent=11 // pred_region
        _
      $region16: #{action_module_forward.1} parent=11 // pred_fallthru
        _
    $region12: #{action_module_forward.1} parent=5 // pred_fallthru
      _
    %p99 = scmp.lt.s32.totalorder %s8, 2
    // Predicated region
    $region17: #{action_module_forward.1} parent=5 // pred_check
      %p100 = pneg %p99
    $region18: #{action_module_forward.1} parent=5 // pred_check_branch
      %102 = sbr.rel (%p100) target = $region20
    $region19: #{action_module_forward.1} parent=5 // pred_region
      // Predicated region
      $region21: #{action_module_forward.1} parent=19 // pred_check
        %p103 = pneg %p28
      $region22: #{action_module_forward.1} parent=19 // pred_check_branch
        %105 = sbr.rel (%p103) target = $region24
      $region23: #{action_module_forward.1} parent=19 // pred_region
        %s106 = smul.u32 32, %s8
        %p107 = scmp.lt.s32.totalorder %s106, 63
        %s108 = scalar_select %p107, %s106, 63
        %s109 = smul.addr %s108, 8
        %s110 = scalar_lea.vmem %s0, %s109
        %s111 = smul.u32 32, %s8
      $region24: #{action_module_forward.1} parent=19 // pred_fallthru
        _
    $region20: #{action_module_forward.1} parent=5 // pred_fallthru
      _
    %p112 = scmp.le.s32.totalorder 1, %s8
    %p113 = scmp.lt.s32.totalorder %s8, 3
    %p114 = pnand %p112, %p113
    %p115 = pneg %p114
    // Predicated region
    $region25: #{action_module_forward.1} parent=5 // pred_check
      _
    $region26: #{action_module_forward.1} parent=5 // pred_check_branch
      %117 = sbr.rel (%p114) target = $region28
    $region27: #{action_module_forward.1} parent=5 // pred_region
      %s118 = ssub.s32 %s8, 1
      %s119 = smul.u32 32, %s13
      %p120 = scmp.lt.s32.totalorder %s119, 63
      %s121 = scalar_select %p120, %s119, 63
      %s122 = smul.addr %s121, 8
      %s123 = scalar_lea.vmem %s0, %s122
      %p124 = pneg %p34
      %p125 = pneg %p31
      %p126 = pneg %p55
      %p127 = pneg %p52
      %p128 = pneg %p81
      %p129 = pneg %p78
      %s130 = smul.u32 32, %s13
      %p131 = scmp.lt.s32.totalorder %s130, 63
      %s132 = scalar_select %p131, %s130, 63
      %s133 = smul.addr %s132, 4
      %s134 = smul.addr %s133, 8
      %s135 = scalar_lea.vmem %s2, %s134
      %s136 = smul.u32 32, %s13
      %p137 = scmp.lt.s32.totalorder %s136, 63
      %s138 = scalar_select %p137, %s136, 63
      %s139 = smul.addr %s138, 8
      %s140 = scalar_lea.vmem %s0, %s139
      %s141 = smul.u32 32, %s13
      %s142 = smul.u32 32, %s13
      %p143 = scmp.lt.s32.totalorder %s142, 63
      %s144 = scalar_select %p143, %s142, 63
      %s145 = smul.addr %s144, 4
      %s146 = smul.addr %s145, 8
      %s147 = scalar_lea.vmem %s2, %s146
      %s148 = smul.u32 32, %s13
      %v150 = vld [vmem:[%s140] sm:$0xff]
      %v151 = vld [vmem:[%s140 + $0x8] sm:$0xff]
      %v152 = vld [vmem:[%s140 + $0x10] sm:$0xff]
      %v153 = vld [vmem:[%s140 + $0x18] sm:$0xff]
      %v154 = vld [vmem:[%s140 + $0x20] sm:$0xff]
      %v155 = vld [vmem:[%s140 + $0x28] sm:$0xff]
      %v156 = vld [vmem:[%s140 + $0x30] sm:$0xff]
      %v157 = vld [vmem:[%s140 + $0x38] sm:$0xff]
      %v158 = vld [vmem:[%s140 + $0x40] sm:$0xff]
      %v159 = vld [vmem:[%s140 + $0x48] sm:$0xff]
      %v160 = vld [vmem:[%s140 + $0x50] sm:$0xff]
      %v161 = vld [vmem:[%s140 + $0x58] sm:$0xff]
      %v162 = vld [vmem:[%s140 + $0x60] sm:$0xff]
      %v163 = vld [vmem:[%s140 + $0x68] sm:$0xff]
      %v164 = vld [vmem:[%s140 + $0x70] sm:$0xff]
      %v165 = vld [vmem:[%s140 + $0x78] sm:$0xff]
      %v166 = vld [vmem:[%s140 + $0x80] sm:$0xff]
      %v167 = vld [vmem:[%s140 + $0x88] sm:$0xff]
      %v168 = vld [vmem:[%s140 + $0x90] sm:$0xff]
      %v169 = vld [vmem:[%s140 + $0x98] sm:$0xff]
      %v170 = vld [vmem:[%s140 + $0xa0] sm:$0xff]
      %v171 = vld [vmem:[%s140 + $0xa8] sm:$0xff]
      %v172 = vld [vmem:[%s140 + $0xb0] sm:$0xff]
      %v173 = vld [vmem:[%s140 + $0xb8] sm:$0xff]
      %v174 = vld [vmem:[%s140 + $0xc0] sm:$0xff]
      %v175 = vld [vmem:[%s140 + $0xc8] sm:$0xff]
      %v176 = vld [vmem:[%s140 + $0xd0] sm:$0xff]
      %v177 = vld [vmem:[%s140 + $0xd8] sm:$0xff]
      %v178 = vld [vmem:[%s140 + $0xe0] sm:$0xff]
      %v179 = vld [vmem:[%s140 + $0xe8] sm:$0xff]
      %v180 = vld [vmem:[%s140 + $0xf0] sm:$0xff]
      %v181 = vld [vmem:[%s140 + $0xf8] sm:$0xff]
      %v182 = vld [vmem:[%s1] sm:$0xf]
      %v183 = vld [vmem:[%s1 + $0x4] sm:$0xf]
      %v184 = vld [vmem:[%s1 + $0x8] sm:$0xf]
      %v185 = vld [vmem:[%s1 + $0xc] sm:$0xf]
      %v186 = vld [vmem:[%s1 + $0x10] sm:$0xf]
      %v187 = vld [vmem:[%s1 + $0x14] sm:$0xf]
      %v188 = vld [vmem:[%s1 + $0x18] sm:$0xf]
      %v189 = vld [vmem:[%s1 + $0x1c] sm:$0xf]
      %v190 = vld [vmem:[%s1 + $0x20] sm:$0xf]
      %v191 = vld [vmem:[%s1 + $0x24] sm:$0xf]
      %v192 = vld [vmem:[%s1 + $0x28] sm:$0xf]
      %v193 = vld [vmem:[%s1 + $0x2c] sm:$0xf]
      %v194 = vld [vmem:[%s1 + $0x30] sm:$0xf]
      %v195 = vld [vmem:[%s1 + $0x34] sm:$0xf]
      %v196 = vld [vmem:[%s1 + $0x38] sm:$0xf]
      %v197 = vld [vmem:[%s1 + $0x3c] sm:$0xf]
      %v198 = vpack.c.bf16 %v151, %v150
      %v199 = vpack.c.bf16 %v153, %v152
      %v200 = vpack.c.bf16 %v155, %v154
      %v201 = vpack.c.bf16 %v157, %v156
      %v202 = vpack.c.bf16 %v159, %v158
      %v203 = vpack.c.bf16 %v161, %v160
      %v204 = vpack.c.bf16 %v163, %v162
      %v205 = vpack.c.bf16 %v165, %v164
      %v206 = vpack.c.bf16 %v167, %v166
      %v207 = vpack.c.bf16 %v169, %v168
      %v208 = vpack.c.bf16 %v171, %v170
      %v209 = vpack.c.bf16 %v173, %v172
      %v210 = vpack.c.bf16 %v175, %v174
      %v211 = vpack.c.bf16 %v177, %v176
      %v212 = vpack.c.bf16 %v179, %v178
      %v213 = vpack.c.bf16 %v181, %v180
      %v230 = vunpack.c.l.b16 %v182
      %v231 = vunpack.c.l.b16 %v183
      %v232 = vunpack.c.l.b16 %v184
      %v233 = vunpack.c.l.b16 %v185
      %v234 = vunpack.c.l.b16 %v186
      %v235 = vunpack.c.l.b16 %v187
      %v236 = vunpack.c.l.b16 %v188
      %v237 = vunpack.c.l.b16 %v189
      %v238 = vunpack.c.l.b16 %v190
      %v239 = vunpack.c.l.b16 %v191
      %v240 = vunpack.c.l.b16 %v192
      %v241 = vunpack.c.l.b16 %v193
      %v242 = vunpack.c.l.b16 %v194
      %v243 = vunpack.c.l.b16 %v195
      %v244 = vunpack.c.l.b16 %v196
      %v245 = vunpack.c.l.b16 %v197
      %v246 = vpack.c.b16 %v231, %v230
      %v247 = vpack.c.b16 %v233, %v232
      %v248 = vpack.c.b16 %v235, %v234
      %v249 = vpack.c.b16 %v237, %v236
      %v250 = vpack.c.b16 %v239, %v238
      %v251 = vpack.c.b16 %v241, %v240
      %v252 = vpack.c.b16 %v243, %v242
      %v253 = vpack.c.b16 %v245, %v244
      %262 = vmatprep.subr.bf16.mxu0 0
      %263 = vmatpush1.bf16.msra.mxu0 %v246
      %264 = vmatprep.subr.bf16.mxu0 0
      %265 = vmatpush1.bf16.msra.mxu0 %v247
      %266 = vmatprep.subr.bf16.mxu0 0
      %267 = vmatpush1.bf16.msra.mxu0 %v248
      %268 = vmatprep.subr.bf16.mxu0 0
      %269 = vmatpush1.bf16.msra.mxu0 %v249
      %270 = vmatprep.subr.bf16.mxu0 0
      %271 = vmatpush1.bf16.msra.mxu0 %v250
      %272 = vmatprep.subr.bf16.mxu0 0
      %273 = vmatpush1.bf16.msra.mxu0 %v251
      %274 = vmatprep.subr.bf16.mxu0 0
      %275 = vmatpush1.bf16.msra.mxu0 %v252
      %276 = vmatprep.subr.bf16.mxu0 0
      %277 = vmatpush1.bf16.msra.mxu0 %v253
      %278 = vmatprep.subr.bf16.mxu0 0
      %279 = vmatpush1.bf16.msra.mxu0 0
      %280 = vmatprep.subr.bf16.mxu0 0
      %281 = vmatpush1.bf16.msra.mxu0 0
      %282 = vmatprep.subr.bf16.mxu0 0
      %283 = vmatpush1.bf16.msra.mxu0 0
      %284 = vmatprep.subr.bf16.mxu0 0
      %285 = vmatpush1.bf16.msra.mxu0 0
      %286 = vmatprep.subr.bf16.mxu0 0
      %287 = vmatpush1.bf16.msra.mxu0 0
      %288 = vmatprep.subr.bf16.mxu0 0
      %289 = vmatpush1.bf16.msra.mxu0 0
      %290 = vmatprep.subr.bf16.mxu0 0
      %291 = vmatpush1.bf16.msra.mxu0 0
      %292 = vmatprep.subr.bf16.mxu0 0
      %293 = vmatpush1.bf16.msra.mxu0 0
      %294 = vmatprep.mubr.bf16.mxu0 0
      %295 = vmatmul.mubr.bf16.gmra.mrb[0].mxu0 %v198
      %v296 = vpop.f32.mrb[0].mxu0
      %v297 = vadd.f32 0.0, %v296
      %v298 = vpop.f32.mrb[0].mxu0
      %v299 = vpop.f32.mrb[0].mxu0
      %v300 = vadd.f32 0.0, %v299
      %v301 = vpop.f32.mrb[0].mxu0
      %302 = vmatprep.mubr.bf16.mxu0 0
      %303 = vmatmul.mubr.bf16.gmra.mrb[0].mxu0 %v199
      %v304 = vpop.f32.mrb[0].mxu0
      %v305 = vadd.f32 0.0, %v304
      %v306 = vpop.f32.mrb[0].mxu0
      %v307 = vpop.f32.mrb[0].mxu0
      %v308 = vadd.f32 0.0, %v307
      %v309 = vpop.f32.mrb[0].mxu0
      %310 = vmatprep.mubr.bf16.mxu0 0
      %311 = vmatmul.mubr.bf16.gmra.mrb[0].mxu0 %v200
      %v312 = vpop.f32.mrb[0].mxu0
      %v313 = vadd.f32 0.0, %v312
      %v314 = vpop.f32.mrb[0].mxu0
      %v315 = vpop.f32.mrb[0].mxu0
      %v316 = vadd.f32 0.0, %v315
      %v317 = vpop.f32.mrb[0].mxu0
      %318 = vmatprep.mubr.bf16.mxu0 0
      %319 = vmatmul.mubr.bf16.gmra.mrb[0].mxu0 %v201
      %v320 = vpop.f32.mrb[0].mxu0
      %v321 = vadd.f32 0.0, %v320
      %v322 = vpop.f32.mrb[0].mxu0
      %v323 = vpop.f32.mrb[0].mxu0
      %v324 = vadd.f32 0.0, %v323
      %v325 = vpop.f32.mrb[0].mxu0
      %326 = vmatprep.mubr.bf16.mxu0 0
      %327 = vmatmul.mubr.bf16.gmra.mrb[0].mxu0 %v202
      %v328 = vpop.f32.mrb[0].mxu0
      %v329 = vadd.f32 0.0, %v328
      %v330 = vpop.f32.mrb[0].mxu0
      %v331 = vpop.f32.mrb[0].mxu0
      %v332 = vadd.f32 0.0, %v331
      %v333 = vpop.f32.mrb[0].mxu0
      %334 = vmatprep.mubr.bf16.mxu0 0
      %335 = vmatmul.mubr.bf16.gmra.mrb[0].mxu0 %v203
      %v336 = vpop.f32.mrb[0].mxu0
      %v337 = vadd.f32 0.0, %v336
      %v338 = vpop.f32.mrb[0].mxu0
      %v339 = vpop.f32.mrb[0].mxu0
      %v340 = vadd.f32 0.0, %v339
      %v341 = vpop.f32.mrb[0].mxu0
      %342 = vmatprep.mubr.bf16.mxu0 0
      %343 = vmatmul.mubr.bf16.gmra.mrb[0].mxu0 %v204
      %v344 = vpop.f32.mrb[0].mxu0
      %v345 = vadd.f32 0.0, %v344
      %v346 = vpop.f32.mrb[0].mxu0
      %v347 = vpop.f32.mrb[0].mxu0
      %v348 = vadd.f32 0.0, %v347
      %v349 = vpop.f32.mrb[0].mxu0
      %350 = vmatprep.mubr.bf16.mxu0 0
      %351 = vmatmul.mubr.bf16.gmra.mrb[0].mxu0 %v205
      %v352 = vpop.f32.mrb[0].mxu0
      %v353 = vadd.f32 0.0, %v352
      %v354 = vpop.f32.mrb[0].mxu0
      %v355 = vpop.f32.mrb[0].mxu0
      %v356 = vadd.f32 0.0, %v355
      %v357 = vpop.f32.mrb[0].mxu0
      %358 = vmatprep.mubr.bf16.mxu0 0
      %359 = vmatmul.mubr.bf16.gmra.mrb[0].mxu0 %v206
      %v360 = vpop.f32.mrb[0].mxu0
      %v361 = vadd.f32 0.0, %v360
      %v362 = vpop.f32.mrb[0].mxu0
      %v363 = vpop.f32.mrb[0].mxu0
      %v364 = vadd.f32 0.0, %v363
      %v365 = vpop.f32.mrb[0].mxu0
      %366 = vmatprep.mubr.bf16.mxu0 0
      %367 = vmatmul.mubr.bf16.gmra.mrb[0].mxu0 %v207
      %v368 = vpop.f32.mrb[0].mxu0
      %v369 = vadd.f32 0.0, %v368
      %v370 = vpop.f32.mrb[0].mxu0
      %v371 = vpop.f32.mrb[0].mxu0
      %v372 = vadd.f32 0.0, %v371
      %v373 = vpop.f32.mrb[0].mxu0
      %374 = vmatprep.mubr.bf16.mxu0 0
      %375 = vmatmul.mubr.bf16.gmra.mrb[0].mxu0 %v208
      %v376 = vpop.f32.mrb[0].mxu0
      %v377 = vadd.f32 0.0, %v376
      %v378 = vpop.f32.mrb[0].mxu0
      %v379 = vpop.f32.mrb[0].mxu0
      %v380 = vadd.f32 0.0, %v379
      %v381 = vpop.f32.mrb[0].mxu0
      %382 = vmatprep.mubr.bf16.mxu0 0
      %383 = vmatmul.mubr.bf16.gmra.mrb[0].mxu0 %v209
      %v384 = vpop.f32.mrb[0].mxu0
      %v385 = vadd.f32 0.0, %v384
      %v386 = vpop.f32.mrb[0].mxu0
      %v387 = vpop.f32.mrb[0].mxu0
      %v388 = vadd.f32 0.0, %v387
      %v389 = vpop.f32.mrb[0].mxu0
      %390 = vmatprep.mubr.bf16.mxu0 0
      %391 = vmatmul.mubr.bf16.gmra.mrb[0].mxu0 %v210
      %v392 = vpop.f32.mrb[0].mxu0
      %v393 = vadd.f32 0.0, %v392
      %v394 = vpop.f32.mrb[0].mxu0
      %v395 = vpop.f32.mrb[0].mxu0
      %v396 = vadd.f32 0.0, %v395
      %v397 = vpop.f32.mrb[0].mxu0
      %398 = vmatprep.mubr.bf16.mxu0 0
      %399 = vmatmul.mubr.bf16.gmra.mrb[0].mxu0 %v211
      %v400 = vpop.f32.mrb[0].mxu0
      %v401 = vadd.f32 0.0, %v400
      %v402 = vpop.f32.mrb[0].mxu0
      %v403 = vpop.f32.mrb[0].mxu0
      %v404 = vadd.f32 0.0, %v403
      %v405 = vpop.f32.mrb[0].mxu0
      %406 = vmatprep.mubr.bf16.mxu0 0
      %407 = vmatmul.mubr.bf16.gmra.mrb[0].mxu0 %v212
      %v408 = vpop.f32.mrb[0].mxu0
      %v409 = vadd.f32 0.0, %v408
      %v410 = vpop.f32.mrb[0].mxu0
      %v411 = vpop.f32.mrb[0].mxu0
      %v412 = vadd.f32 0.0, %v411
      %v413 = vpop.f32.mrb[0].mxu0
      %414 = vmatprep.mubr.bf16.mxu0 0
      %415 = vmatmul.mubr.bf16.gmra.mrb[0].mxu0 %v213
      %v416 = vpop.f32.mrb[0].mxu0
      %v417 = vadd.f32 0.0, %v416
      %v418 = vpop.f32.mrb[0].mxu0
      %v419 = vpop.f32.mrb[0].mxu0
      %v420 = vadd.f32 0.0, %v419
      %v421 = vpop.f32.mrb[0].mxu0
      %422 = vdwg.mxu0
      %v423 = vmax.f32 %v297, 0.0
      %v424 = vmax.f32 %v300, 0.0
      %v425 = vmax.f32 %v305, 0.0
      %v426 = vmax.f32 %v308, 0.0
      %v427 = vmax.f32 %v313, 0.0
      %v428 = vmax.f32 %v316, 0.0
      %v429 = vmax.f32 %v321, 0.0
      %v430 = vmax.f32 %v324, 0.0
      %v431 = vmax.f32 %v329, 0.0
      %v432 = vmax.f32 %v332, 0.0
      %v433 = vmax.f32 %v337, 0.0
      %v434 = vmax.f32 %v340, 0.0
      %v435 = vmax.f32 %v345, 0.0
      %v436 = vmax.f32 %v348, 0.0
      %v437 = vmax.f32 %v353, 0.0
      %v438 = vmax.f32 %v356, 0.0
      %v439 = vmax.f32 %v361, 0.0
      %v440 = vmax.f32 %v364, 0.0
      %v441 = vmax.f32 %v369, 0.0
      %v442 = vmax.f32 %v372, 0.0
      %v443 = vmax.f32 %v377, 0.0
      %v444 = vmax.f32 %v380, 0.0
      %v445 = vmax.f32 %v385, 0.0
      %v446 = vmax.f32 %v388, 0.0
      %v447 = vmax.f32 %v393, 0.0
      %v448 = vmax.f32 %v396, 0.0
      %v449 = vmax.f32 %v401, 0.0
      %v450 = vmax.f32 %v404, 0.0
      %v451 = vmax.f32 %v409, 0.0
      %v452 = vmax.f32 %v412, 0.0
      %v453 = vmax.f32 %v417, 0.0
      %v454 = vmax.f32 %v420, 0.0
      %v455 = vld [vmem:[%s1 + $0x40] sm:$0xf]
      %v456 = vld [vmem:[%s1 + $0x44] sm:$0xf]
      %v457 = vld [vmem:[%s1 + $0x48] sm:$0xf]
      %v458 = vld [vmem:[%s1 + $0x4c] sm:$0xf]
      %v459 = vld [vmem:[%s1 + $0x50] sm:$0xf]
      %v460 = vld [vmem:[%s1 + $0x54] sm:$0xf]
      %v461 = vld [vmem:[%s1 + $0x58] sm:$0xf]
      %v462 = vld [vmem:[%s1 + $0x5c] sm:$0xf]
      %v463 = vld [vmem:[%s1 + $0x60] sm:$0xf]
      %v464 = vld [vmem:[%s1 + $0x64] sm:$0xf]
      %v465 = vld [vmem:[%s1 + $0x68] sm:$0xf]
      %v466 = vld [vmem:[%s1 + $0x6c] sm:$0xf]
      %v467 = vld [vmem:[%s1 + $0x70] sm:$0xf]
      %v468 = vld [vmem:[%s1 + $0x74] sm:$0xf]
      %v469 = vld [vmem:[%s1 + $0x78] sm:$0xf]
      %v470 = vld [vmem:[%s1 + $0x7c] sm:$0xf]
      %v471 = vpack.c.bf16 %v424, %v423
      %v472 = vpack.c.bf16 %v426, %v425
      %v473 = vpack.c.bf16 %v428, %v427
      %v474 = vpack.c.bf16 %v430, %v429
      %v475 = vpack.c.bf16 %v432, %v431
      %v476 = vpack.c.bf16 %v434, %v433
      %v477 = vpack.c.bf16 %v436, %v435
      %v478 = vpack.c.bf16 %v438, %v437
      %v479 = vpack.c.bf16 %v440, %v439
      %v480 = vpack.c.bf16 %v442, %v441
      %v481 = vpack.c.bf16 %v444, %v443
      %v482 = vpack.c.bf16 %v446, %v445
      %v483 = vpack.c.bf16 %v448, %v447
      %v484 = vpack.c.bf16 %v450, %v449
      %v485 = vpack.c.bf16 %v452, %v451
      %v486 = vpack.c.bf16 %v454, %v453
      %v503 = vunpack.c.l.b16 %v455
      %v504 = vunpack.c.l.b16 %v456
      %v505 = vunpack.c.l.b16 %v457
      %v506 = vunpack.c.l.b16 %v458
      %v507 = vunpack.c.l.b16 %v459
      %v508 = vunpack.c.l.b16 %v460
      %v509 = vunpack.c.l.b16 %v461
      %v510 = vunpack.c.l.b16 %v462
      %v511 = vunpack.c.l.b16 %v463
      %v512 = vunpack.c.l.b16 %v464
      %v513 = vunpack.c.l.b16 %v465
      %v514 = vunpack.c.l.b16 %v466
      %v515 = vunpack.c.l.b16 %v467
      %v516 = vunpack.c.l.b16 %v468
      %v517 = vunpack.c.l.b16 %v469
      %v518 = vunpack.c.l.b16 %v470
      %v519 = vpack.c.b16 %v504, %v503
      %v520 = vpack.c.b16 %v506, %v505
      %v521 = vpack.c.b16 %v508, %v507
      %v522 = vpack.c.b16 %v510, %v509
      %v523 = vpack.c.b16 %v512, %v511
      %v524 = vpack.c.b16 %v514, %v513
      %v525 = vpack.c.b16 %v516, %v515
      %v526 = vpack.c.b16 %v518, %v517
      %535 = vmatprep.subr.bf16.mxu0 0
      %536 = vmatpush1.bf16.msra.mxu0 %v519
      %537 = vmatprep.subr.bf16.mxu0 0
      %538 = vmatpush1.bf16.msra.mxu0 %v520
      %539 = vmatprep.subr.bf16.mxu0 0
      %540 = vmatpush1.bf16.msra.mxu0 %v521
      %541 = vmatprep.subr.bf16.mxu0 0
      %542 = vmatpush1.bf16.msra.mxu0 %v522
      %543 = vmatprep.subr.bf16.mxu0 0
      %544 = vmatpush1.bf16.msra.mxu0 %v523
      %545 = vmatprep.subr.bf16.mxu0 0
      %546 = vmatpush1.bf16.msra.mxu0 %v524
      %547 = vmatprep.subr.bf16.mxu0 0
      %548 = vmatpush1.bf16.msra.mxu0 %v525
      %549 = vmatprep.subr.bf16.mxu0 0
      %550 = vmatpush1.bf16.msra.mxu0 %v526
      %551 = vmatprep.subr.bf16.mxu0 0
      %552 = vmatpush1.bf16.msra.mxu0 0
      %553 = vmatprep.subr.bf16.mxu0 0
      %554 = vmatpush1.bf16.msra.mxu0 0
      %555 = vmatprep.subr.bf16.mxu0 0
      %556 = vmatpush1.bf16.msra.mxu0 0
      %557 = vmatprep.subr.bf16.mxu0 0
      %558 = vmatpush1.bf16.msra.mxu0 0
      %559 = vmatprep.subr.bf16.mxu0 0
      %560 = vmatpush1.bf16.msra.mxu0 0
      %561 = vmatprep.subr.bf16.mxu0 0
      %562 = vmatpush1.bf16.msra.mxu0 0
      %563 = vmatprep.subr.bf16.mxu0 0
      %564 = vmatpush1.bf16.msra.mxu0 0
      %565 = vmatprep.subr.bf16.mxu0 0
      %566 = vmatpush1.bf16.msra.mxu0 0
      %567 = vmatprep.mubr.bf16.mxu0 0
      %568 = vmatmul.mubr.bf16.gmra.mrb[0].mxu0 %v471
      %v569 = vpop.f32.mrb[0].mxu0
      %v570 = vadd.f32 0.0, %v569
      %v571 = vpop.f32.mrb[0].mxu0
      %v572 = vpop.f32.mrb[0].mxu0
      %v573 = vadd.f32 0.0, %v572
      %v574 = vpop.f32.mrb[0].mxu0
      %575 = vmatprep.mubr.bf16.mxu0 0
      %576 = vmatmul.mubr.bf16.gmra.mrb[0].mxu0 %v472
      %v577 = vpop.f32.mrb[0].mxu0
      %v578 = vadd.f32 0.0, %v577
      %v579 = vpop.f32.mrb[0].mxu0
      %v580 = vpop.f32.mrb[0].mxu0
      %v581 = vadd.f32 0.0, %v580
      %v582 = vpop.f32.mrb[0].mxu0
      %583 = vmatprep.mubr.bf16.mxu0 0
      %584 = vmatmul.mubr.bf16.gmra.mrb[0].mxu0 %v473
      %v585 = vpop.f32.mrb[0].mxu0
      %v586 = vadd.f32 0.0, %v585
      %v587 = vpop.f32.mrb[0].mxu0
      %v588 = vpop.f32.mrb[0].mxu0
      %v589 = vadd.f32 0.0, %v588
      %v590 = vpop.f32.mrb[0].mxu0
      %591 = vmatprep.mubr.bf16.mxu0 0
      %592 = vmatmul.mubr.bf16.gmra.mrb[0].mxu0 %v474
      %v593 = vpop.f32.mrb[0].mxu0
      %v594 = vadd.f32 0.0, %v593
      %v595 = vpop.f32.mrb[0].mxu0
      %v596 = vpop.f32.mrb[0].mxu0
      %v597 = vadd.f32 0.0, %v596
      %v598 = vpop.f32.mrb[0].mxu0
      %599 = vmatprep.mubr.bf16.mxu0 0
      %600 = vmatmul.mubr.bf16.gmra.mrb[0].mxu0 %v475
      %v601 = vpop.f32.mrb[0].mxu0
      %v602 = vadd.f32 0.0, %v601
      %v603 = vpop.f32.mrb[0].mxu0
      %v604 = vpop.f32.mrb[0].mxu0
      %v605 = vadd.f32 0.0, %v604
      %v606 = vpop.f32.mrb[0].mxu0
      %607 = vmatprep.mubr.bf16.mxu0 0
      %608 = vmatmul.mubr.bf16.gmra.mrb[0].mxu0 %v476
      %v609 = vpop.f32.mrb[0].mxu0
      %v610 = vadd.f32 0.0, %v609
      %v611 = vpop.f32.mrb[0].mxu0
      %v612 = vpop.f32.mrb[0].mxu0
      %v613 = vadd.f32 0.0, %v612
      %v614 = vpop.f32.mrb[0].mxu0
      %615 = vmatprep.mubr.bf16.mxu0 0
      %616 = vmatmul.mubr.bf16.gmra.mrb[0].mxu0 %v477
      %v617 = vpop.f32.mrb[0].mxu0
      %v618 = vadd.f32 0.0, %v617
      %v619 = vpop.f32.mrb[0].mxu0
      %v620 = vpop.f32.mrb[0].mxu0
      %v621 = vadd.f32 0.0, %v620
      %v622 = vpop.f32.mrb[0].mxu0
      %623 = vmatprep.mubr.bf16.mxu0 0
      %624 = vmatmul.mubr.bf16.gmra.mrb[0].mxu0 %v478
      %v625 = vpop.f32.mrb[0].mxu0
      %v626 = vadd.f32 0.0, %v625
      %v627 = vpop.f32.mrb[0].mxu0
      %v628 = vpop.f32.mrb[0].mxu0
      %v629 = vadd.f32 0.0, %v628
      %v630 = vpop.f32.mrb[0].mxu0
      %631 = vmatprep.mubr.bf16.mxu0 0
      %632 = vmatmul.mubr.bf16.gmra.mrb[0].mxu0 %v479
      %v633 = vpop.f32.mrb[0].mxu0
      %v634 = vadd.f32 0.0, %v633
      %v635 = vpop.f32.mrb[0].mxu0
      %v636 = vpop.f32.mrb[0].mxu0
      %v637 = vadd.f32 0.0, %v636
      %v638 = vpop.f32.mrb[0].mxu0
      %639 = vmatprep.mubr.bf16.mxu0 0
      %640 = vmatmul.mubr.bf16.gmra.mrb[0].mxu0 %v480
      %v641 = vpop.f32.mrb[0].mxu0
      %v642 = vadd.f32 0.0, %v641
      %v643 = vpop.f32.mrb[0].mxu0
      %v644 = vpop.f32.mrb[0].mxu0
      %v645 = vadd.f32 0.0, %v644
      %v646 = vpop.f32.mrb[0].mxu0
      %647 = vmatprep.mubr.bf16.mxu0 0
      %648 = vmatmul.mubr.bf16.gmra.mrb[0].mxu0 %v481
      %v649 = vpop.f32.mrb[0].mxu0
      %v650 = vadd.f32 0.0, %v649
      %v651 = vpop.f32.mrb[0].mxu0
      %v652 = vpop.f32.mrb[0].mxu0
      %v653 = vadd.f32 0.0, %v652
      %v654 = vpop.f32.mrb[0].mxu0
      %655 = vmatprep.mubr.bf16.mxu0 0
      %656 = vmatmul.mubr.bf16.gmra.mrb[0].mxu0 %v482
      %v657 = vpop.f32.mrb[0].mxu0
      %v658 = vadd.f32 0.0, %v657
      %v659 = vpop.f32.mrb[0].mxu0
      %v660 = vpop.f32.mrb[0].mxu0
      %v661 = vadd.f32 0.0, %v660
      %v662 = vpop.f32.mrb[0].mxu0
      %663 = vmatprep.mubr.bf16.mxu0 0
      %664 = vmatmul.mubr.bf16.gmra.mrb[0].mxu0 %v483
      %v665 = vpop.f32.mrb[0].mxu0
      %v666 = vadd.f32 0.0, %v665
      %v667 = vpop.f32.mrb[0].mxu0
      %v668 = vpop.f32.mrb[0].mxu0
      %v669 = vadd.f32 0.0, %v668
      %v670 = vpop.f32.mrb[0].mxu0
      %671 = vmatprep.mubr.bf16.mxu0 0
      %672 = vmatmul.mubr.bf16.gmra.mrb[0].mxu0 %v484
      %v673 = vpop.f32.mrb[0].mxu0
      %v674 = vadd.f32 0.0, %v673
      %v675 = vpop.f32.mrb[0].mxu0
      %v676 = vpop.f32.mrb[0].mxu0
      %v677 = vadd.f32 0.0, %v676
      %v678 = vpop.f32.mrb[0].mxu0
      %679 = vmatprep.mubr.bf16.mxu0 0
      %680 = vmatmul.mubr.bf16.gmra.mrb[0].mxu0 %v485
      %v681 = vpop.f32.mrb[0].mxu0
      %v682 = vadd.f32 0.0, %v681
      %v683 = vpop.f32.mrb[0].mxu0
      %v684 = vpop.f32.mrb[0].mxu0
      %v685 = vadd.f32 0.0, %v684
      %v686 = vpop.f32.mrb[0].mxu0
      %687 = vmatprep.mubr.bf16.mxu0 0
      %688 = vmatmul.mubr.bf16.gmra.mrb[0].mxu0 %v486
      %v689 = vpop.f32.mrb[0].mxu0
      %v690 = vadd.f32 0.0, %v689
      %v691 = vpop.f32.mrb[0].mxu0
      %v692 = vpop.f32.mrb[0].mxu0
      %v693 = vadd.f32 0.0, %v692
      %v694 = vpop.f32.mrb[0].mxu0
      %695 = vdwg.mxu0
      %v696 = vmax.f32 %v570, 0.0
      %v697 = vmax.f32 %v573, 0.0
      %v698 = vmax.f32 %v578, 0.0
      %v699 = vmax.f32 %v581, 0.0
      %v700 = vmax.f32 %v586, 0.0
      %v701 = vmax.f32 %v589, 0.0
      %v702 = vmax.f32 %v594, 0.0
      %v703 = vmax.f32 %v597, 0.0
      %v704 = vmax.f32 %v602, 0.0
      %v705 = vmax.f32 %v605, 0.0
      %v706 = vmax.f32 %v610, 0.0
      %v707 = vmax.f32 %v613, 0.0
      %v708 = vmax.f32 %v618, 0.0
      %v709 = vmax.f32 %v621, 0.0
      %v710 = vmax.f32 %v626, 0.0
      %v711 = vmax.f32 %v629, 0.0
      %v712 = vmax.f32 %v634, 0.0
      %v713 = vmax.f32 %v637, 0.0
      %v714 = vmax.f32 %v642, 0.0
      %v715 = vmax.f32 %v645, 0.0
      %v716 = vmax.f32 %v650, 0.0
      %v717 = vmax.f32 %v653, 0.0
      %v718 = vmax.f32 %v658, 0.0
      %v719 = vmax.f32 %v661, 0.0
      %v720 = vmax.f32 %v666, 0.0
      %v721 = vmax.f32 %v669, 0.0
      %v722 = vmax.f32 %v674, 0.0
      %v723 = vmax.f32 %v677, 0.0
      %v724 = vmax.f32 %v682, 0.0
      %v725 = vmax.f32 %v685, 0.0
      %v726 = vmax.f32 %v690, 0.0
      %v727 = vmax.f32 %v693, 0.0
      %v728 = vld [vmem:[%s1 + $0x80] sm:$0xf]
      %v729 = vld [vmem:[%s1 + $0x84] sm:$0xf]
      %v730 = vld [vmem:[%s1 + $0x88] sm:$0xf]
      %v731 = vld [vmem:[%s1 + $0x8c] sm:$0xf]
      %v732 = vld [vmem:[%s1 + $0x90] sm:$0xf]
      %v733 = vld [vmem:[%s1 + $0x94] sm:$0xf]
      %v734 = vld [vmem:[%s1 + $0x98] sm:$0xf]
      %v735 = vld [vmem:[%s1 + $0x9c] sm:$0xf]
      %v736 = vld [vmem:[%s1 + $0xa0] sm:$0xf]
      %v737 = vld [vmem:[%s1 + $0xa4] sm:$0xf]
      %v738 = vld [vmem:[%s1 + $0xa8] sm:$0xf]
      %v739 = vld [vmem:[%s1 + $0xac] sm:$0xf]
      %v740 = vld [vmem:[%s1 + $0xb0] sm:$0xf]
      %v741 = vld [vmem:[%s1 + $0xb4] sm:$0xf]
      %v742 = vld [vmem:[%s1 + $0xb8] sm:$0xf]
      %v743 = vld [vmem:[%s1 + $0xbc] sm:$0xf]
      %v744 = vpack.c.bf16 %v697, %v696
      %v745 = vpack.c.bf16 %v699, %v698
      %v746 = vpack.c.bf16 %v701, %v700
      %v747 = vpack.c.bf16 %v703, %v702
      %v748 = vpack.c.bf16 %v705, %v704
      %v749 = vpack.c.bf16 %v707, %v706
      %v750 = vpack.c.bf16 %v709, %v708
      %v751 = vpack.c.bf16 %v711, %v710
      %v752 = vpack.c.bf16 %v713, %v712
      %v753 = vpack.c.bf16 %v715, %v714
      %v754 = vpack.c.bf16 %v717, %v716
      %v755 = vpack.c.bf16 %v719, %v718
      %v756 = vpack.c.bf16 %v721, %v720
      %v757 = vpack.c.bf16 %v723, %v722
      %v758 = vpack.c.bf16 %v725, %v724
      %v759 = vpack.c.bf16 %v727, %v726
      %v776 = vunpack.c.l.b16 %v728
      %v777 = vunpack.c.l.b16 %v729
      %v778 = vunpack.c.l.b16 %v730
      %v779 = vunpack.c.l.b16 %v731
      %v780 = vunpack.c.l.b16 %v732
      %v781 = vunpack.c.l.b16 %v733
      %v782 = vunpack.c.l.b16 %v734
      %v783 = vunpack.c.l.b16 %v735
      %v784 = vunpack.c.l.b16 %v736
      %v785 = vunpack.c.l.b16 %v737
      %v786 = vunpack.c.l.b16 %v738
      %v787 = vunpack.c.l.b16 %v739
      %v788 = vunpack.c.l.b16 %v740
      %v789 = vunpack.c.l.b16 %v741
      %v790 = vunpack.c.l.b16 %v742
      %v791 = vunpack.c.l.b16 %v743
      %v792 = vpack.c.b16 %v777, %v776
      %v793 = vpack.c.b16 %v779, %v778
      %v794 = vpack.c.b16 %v781, %v780
      %v795 = vpack.c.b16 %v783, %v782
      %v796 = vpack.c.b16 %v785, %v784
      %v797 = vpack.c.b16 %v787, %v786
      %v798 = vpack.c.b16 %v789, %v788
      %v799 = vpack.c.b16 %v791, %v790
      %808 = vmatprep.subr.bf16.mxu0 0
      %809 = vmatpush1.bf16.msra.mxu0 %v792
      %810 = vmatprep.subr.bf16.mxu0 0
      %811 = vmatpush1.bf16.msra.mxu0 %v793
      %812 = vmatprep.subr.bf16.mxu0 0
      %813 = vmatpush1.bf16.msra.mxu0 %v794
      %814 = vmatprep.subr.bf16.mxu0 0
      %815 = vmatpush1.bf16.msra.mxu0 %v795
      %816 = vmatprep.subr.bf16.mxu0 0
      %817 = vmatpush1.bf16.msra.mxu0 %v796
      %818 = vmatprep.subr.bf16.mxu0 0
      %819 = vmatpush1.bf16.msra.mxu0 %v797
      %820 = vmatprep.subr.bf16.mxu0 0
      %821 = vmatpush1.bf16.msra.mxu0 %v798
      %822 = vmatprep.subr.bf16.mxu0 0
      %823 = vmatpush1.bf16.msra.mxu0 %v799
      %824 = vmatprep.subr.bf16.mxu0 0
      %825 = vmatpush1.bf16.msra.mxu0 0
      %826 = vmatprep.subr.bf16.mxu0 0
      %827 = vmatpush1.bf16.msra.mxu0 0
      %828 = vmatprep.subr.bf16.mxu0 0
      %829 = vmatpush1.bf16.msra.mxu0 0
      %830 = vmatprep.subr.bf16.mxu0 0
      %831 = vmatpush1.bf16.msra.mxu0 0
      %832 = vmatprep.subr.bf16.mxu0 0
      %833 = vmatpush1.bf16.msra.mxu0 0
      %834 = vmatprep.subr.bf16.mxu0 0
      %835 = vmatpush1.bf16.msra.mxu0 0
      %836 = vmatprep.subr.bf16.mxu0 0
      %837 = vmatpush1.bf16.msra.mxu0 0
      %838 = vmatprep.subr.bf16.mxu0 0
      %839 = vmatpush1.bf16.msra.mxu0 0
      %840 = vmatprep.mubr.bf16.mxu0 0
      %841 = vmatmul.mubr.bf16.gmra.mrb[0].mxu0 %v744
      %v842 = vpop.f32.mrb[0].mxu0
      %v843 = vadd.f32 0.0, %v842
      %v844 = vpop.f32.mrb[0].mxu0
      %v845 = vpop.f32.mrb[0].mxu0
      %v846 = vadd.f32 0.0, %v845
      %v847 = vpop.f32.mrb[0].mxu0
      %848 = vmatprep.mubr.bf16.mxu0 0
      %849 = vmatmul.mubr.bf16.gmra.mrb[0].mxu0 %v745
      %v850 = vpop.f32.mrb[0].mxu0
      %v851 = vadd.f32 0.0, %v850
      %v852 = vpop.f32.mrb[0].mxu0
      %v853 = vpop.f32.mrb[0].mxu0
      %v854 = vadd.f32 0.0, %v853
      %v855 = vpop.f32.mrb[0].mxu0
      %856 = vmatprep.mubr.bf16.mxu0 0
      %857 = vmatmul.mubr.bf16.gmra.mrb[0].mxu0 %v746
      %v858 = vpop.f32.mrb[0].mxu0
      %v859 = vadd.f32 0.0, %v858
      %v860 = vpop.f32.mrb[0].mxu0
      %v861 = vpop.f32.mrb[0].mxu0
      %v862 = vadd.f32 0.0, %v861
      %v863 = vpop.f32.mrb[0].mxu0
      %864 = vmatprep.mubr.bf16.mxu0 0
      %865 = vmatmul.mubr.bf16.gmra.mrb[0].mxu0 %v747
      %v866 = vpop.f32.mrb[0].mxu0
      %v867 = vadd.f32 0.0, %v866
      %v868 = vpop.f32.mrb[0].mxu0
      %v869 = vpop.f32.mrb[0].mxu0
      %v870 = vadd.f32 0.0, %v869
      %v871 = vpop.f32.mrb[0].mxu0
      %872 = vmatprep.mubr.bf16.mxu0 0
      %873 = vmatmul.mubr.bf16.gmra.mrb[0].mxu0 %v748
      %v874 = vpop.f32.mrb[0].mxu0
      %v875 = vadd.f32 0.0, %v874
      %v876 = vpop.f32.mrb[0].mxu0
      %v877 = vpop.f32.mrb[0].mxu0
      %v878 = vadd.f32 0.0, %v877
      %v879 = vpop.f32.mrb[0].mxu0
      %880 = vmatprep.mubr.bf16.mxu0 0
      %881 = vmatmul.mubr.bf16.gmra.mrb[0].mxu0 %v749
      %v882 = vpop.f32.mrb[0].mxu0
      %v883 = vadd.f32 0.0, %v882
      %v884 = vpop.f32.mrb[0].mxu0
      %v885 = vpop.f32.mrb[0].mxu0
      %v886 = vadd.f32 0.0, %v885
      %v887 = vpop.f32.mrb[0].mxu0
      %888 = vmatprep.mubr.bf16.mxu0 0
      %889 = vmatmul.mubr.bf16.gmra.mrb[0].mxu0 %v750
      %v890 = vpop.f32.mrb[0].mxu0
      %v891 = vadd.f32 0.0, %v890
      %v892 = vpop.f32.mrb[0].mxu0
      %v893 = vpop.f32.mrb[0].mxu0
      %v894 = vadd.f32 0.0, %v893
      %v895 = vpop.f32.mrb[0].mxu0
      %896 = vmatprep.mubr.bf16.mxu0 0
      %897 = vmatmul.mubr.bf16.gmra.mrb[0].mxu0 %v751
      %v898 = vpop.f32.mrb[0].mxu0
      %v899 = vadd.f32 0.0, %v898
      %v900 = vpop.f32.mrb[0].mxu0
      %v901 = vpop.f32.mrb[0].mxu0
      %v902 = vadd.f32 0.0, %v901
      %v903 = vpop.f32.mrb[0].mxu0
      %904 = vmatprep.mubr.bf16.mxu0 0
      %905 = vmatmul.mubr.bf16.gmra.mrb[0].mxu0 %v752
      %v906 = vpop.f32.mrb[0].mxu0
      %v907 = vadd.f32 0.0, %v906
      %v908 = vpop.f32.mrb[0].mxu0
      %v909 = vpop.f32.mrb[0].mxu0
      %v910 = vadd.f32 0.0, %v909
      %v911 = vpop.f32.mrb[0].mxu0
      %912 = vmatprep.mubr.bf16.mxu0 0
      %913 = vmatmul.mubr.bf16.gmra.mrb[0].mxu0 %v753
      %v914 = vpop.f32.mrb[0].mxu0
      %v915 = vadd.f32 0.0, %v914
      %v916 = vpop.f32.mrb[0].mxu0
      %v917 = vpop.f32.mrb[0].mxu0
      %v918 = vadd.f32 0.0, %v917
      %v919 = vpop.f32.mrb[0].mxu0
      %920 = vmatprep.mubr.bf16.mxu0 0
      %921 = vmatmul.mubr.bf16.gmra.mrb[0].mxu0 %v754
      %v922 = vpop.f32.mrb[0].mxu0
      %v923 = vadd.f32 0.0, %v922
      %v924 = vpop.f32.mrb[0].mxu0
      %v925 = vpop.f32.mrb[0].mxu0
      %v926 = vadd.f32 0.0, %v925
      %v927 = vpop.f32.mrb[0].mxu0
      %928 = vmatprep.mubr.bf16.mxu0 0
      %929 = vmatmul.mubr.bf16.gmra.mrb[0].mxu0 %v755
      %v930 = vpop.f32.mrb[0].mxu0
      %v931 = vadd.f32 0.0, %v930
      %v932 = vpop.f32.mrb[0].mxu0
      %v933 = vpop.f32.mrb[0].mxu0
      %v934 = vadd.f32 0.0, %v933
      %v935 = vpop.f32.mrb[0].mxu0
      %936 = vmatprep.mubr.bf16.mxu0 0
      %937 = vmatmul.mubr.bf16.gmra.mrb[0].mxu0 %v756
      %v938 = vpop.f32.mrb[0].mxu0
      %v939 = vadd.f32 0.0, %v938
      %v940 = vpop.f32.mrb[0].mxu0
      %v941 = vpop.f32.mrb[0].mxu0
      %v942 = vadd.f32 0.0, %v941
      %v943 = vpop.f32.mrb[0].mxu0
      %944 = vmatprep.mubr.bf16.mxu0 0
      %945 = vmatmul.mubr.bf16.gmra.mrb[0].mxu0 %v757
      %v946 = vpop.f32.mrb[0].mxu0
      %v947 = vadd.f32 0.0, %v946
      %v948 = vpop.f32.mrb[0].mxu0
      %v949 = vpop.f32.mrb[0].mxu0
      %v950 = vadd.f32 0.0, %v949
      %v951 = vpop.f32.mrb[0].mxu0
      %952 = vmatprep.mubr.bf16.mxu0 0
      %953 = vmatmul.mubr.bf16.gmra.mrb[0].mxu0 %v758
      %v954 = vpop.f32.mrb[0].mxu0
      %v955 = vadd.f32 0.0, %v954
      %v956 = vpop.f32.mrb[0].mxu0
      %v957 = vpop.f32.mrb[0].mxu0
      %v958 = vadd.f32 0.0, %v957
      %v959 = vpop.f32.mrb[0].mxu0
      %960 = vmatprep.mubr.bf16.mxu0 0
      %961 = vmatmul.mubr.bf16.gmra.mrb[0].mxu0 %v759
      %v962 = vpop.f32.mrb[0].mxu0
      %v963 = vadd.f32 0.0, %v962
      %v964 = vpop.f32.mrb[0].mxu0
      %v965 = vpop.f32.mrb[0].mxu0
      %v966 = vadd.f32 0.0, %v965
      %v967 = vpop.f32.mrb[0].mxu0
      %968 = vdwg.mxu0
      %v969 = vmax.f32 %v843, 0.0
      %v970 = vmax.f32 %v846, 0.0
      %v971 = vmax.f32 %v851, 0.0
      %v972 = vmax.f32 %v854, 0.0
      %v973 = vmax.f32 %v859, 0.0
      %v974 = vmax.f32 %v862, 0.0
      %v975 = vmax.f32 %v867, 0.0
      %v976 = vmax.f32 %v870, 0.0
      %v977 = vmax.f32 %v875, 0.0
      %v978 = vmax.f32 %v878, 0.0
      %v979 = vmax.f32 %v883, 0.0
      %v980 = vmax.f32 %v886, 0.0
      %v981 = vmax.f32 %v891, 0.0
      %v982 = vmax.f32 %v894, 0.0
      %v983 = vmax.f32 %v899, 0.0
      %v984 = vmax.f32 %v902, 0.0
      %v985 = vmax.f32 %v907, 0.0
      %v986 = vmax.f32 %v910, 0.0
      %v987 = vmax.f32 %v915, 0.0
      %v988 = vmax.f32 %v918, 0.0
      %v989 = vmax.f32 %v923, 0.0
      %v990 = vmax.f32 %v926, 0.0
      %v991 = vmax.f32 %v931, 0.0
      %v992 = vmax.f32 %v934, 0.0
      %v993 = vmax.f32 %v939, 0.0
      %v994 = vmax.f32 %v942, 0.0
      %v995 = vmax.f32 %v947, 0.0
      %v996 = vmax.f32 %v950, 0.0
      %v997 = vmax.f32 %v955, 0.0
      %v998 = vmax.f32 %v958, 0.0
      %v999 = vmax.f32 %v963, 0.0
      %v1000 = vmax.f32 %v966, 0.0
      %v1001 = vld [vmem:[%s1 + $0xc0] sm:$0xf]
      %v1002 = vld [vmem:[%s1 + $0xc4] sm:$0xf]
      %v1003 = vld [vmem:[%s1 + $0xc8] sm:$0xf]
      %v1004 = vld [vmem:[%s1 + $0xcc] sm:$0xf]
      %v1005 = vld [vmem:[%s1 + $0xd0] sm:$0xf]
      %v1006 = vld [vmem:[%s1 + $0xd4] sm:$0xf]
      %v1007 = vld [vmem:[%s1 + $0xd8] sm:$0xf]
      %v1008 = vld [vmem:[%s1 + $0xdc] sm:$0xf]
      %v1009 = vld [vmem:[%s1 + $0xe0] sm:$0xf]
      %v1010 = vld [vmem:[%s1 + $0xe4] sm:$0xf]
      %v1011 = vld [vmem:[%s1 + $0xe8] sm:$0xf]
      %v1012 = vld [vmem:[%s1 + $0xec] sm:$0xf]
      %v1013 = vld [vmem:[%s1 + $0xf0] sm:$0xf]
      %v1014 = vld [vmem:[%s1 + $0xf4] sm:$0xf]
      %v1015 = vld [vmem:[%s1 + $0xf8] sm:$0xf]
      %v1016 = vld [vmem:[%s1 + $0xfc] sm:$0xf]
      %v1017 = vpack.c.bf16 %v970, %v969
      %v1018 = vpack.c.bf16 %v972, %v971
      %v1019 = vpack.c.bf16 %v974, %v973
      %v1020 = vpack.c.bf16 %v976, %v975
      %v1021 = vpack.c.bf16 %v978, %v977
      %v1022 = vpack.c.bf16 %v980, %v979
      %v1023 = vpack.c.bf16 %v982, %v981
      %v1024 = vpack.c.bf16 %v984, %v983
      %v1025 = vpack.c.bf16 %v986, %v985
      %v1026 = vpack.c.bf16 %v988, %v987
      %v1027 = vpack.c.bf16 %v990, %v989
      %v1028 = vpack.c.bf16 %v992, %v991
      %v1029 = vpack.c.bf16 %v994, %v993
      %v1030 = vpack.c.bf16 %v996, %v995
      %v1031 = vpack.c.bf16 %v998, %v997
      %v1032 = vpack.c.bf16 %v1000, %v999
      %v1049 = vunpack.c.l.b16 %v1001
      %v1050 = vunpack.c.l.b16 %v1002
      %v1051 = vunpack.c.l.b16 %v1003
      %v1052 = vunpack.c.l.b16 %v1004
      %v1053 = vunpack.c.l.b16 %v1005
      %v1054 = vunpack.c.l.b16 %v1006
      %v1055 = vunpack.c.l.b16 %v1007
      %v1056 = vunpack.c.l.b16 %v1008
      %v1057 = vunpack.c.l.b16 %v1009
      %v1058 = vunpack.c.l.b16 %v1010
      %v1059 = vunpack.c.l.b16 %v1011
      %v1060 = vunpack.c.l.b16 %v1012
      %v1061 = vunpack.c.l.b16 %v1013
      %v1062 = vunpack.c.l.b16 %v1014
      %v1063 = vunpack.c.l.b16 %v1015
      %v1064 = vunpack.c.l.b16 %v1016
      %v1065 = vpack.c.b16 %v1050, %v1049
      %v1066 = vpack.c.b16 %v1052, %v1051
      %v1067 = vpack.c.b16 %v1054, %v1053
      %v1068 = vpack.c.b16 %v1056, %v1055
      %v1069 = vpack.c.b16 %v1058, %v1057
      %v1070 = vpack.c.b16 %v1060, %v1059
      %v1071 = vpack.c.b16 %v1062, %v1061
      %v1072 = vpack.c.b16 %v1064, %v1063
      %1081 = vmatprep.subr.bf16.mxu0 0
      %1082 = vmatpush1.bf16.msra.mxu0 %v1065
      %1083 = vmatprep.subr.bf16.mxu0 0
      %1084 = vmatpush1.bf16.msra.mxu0 %v1066
      %1085 = vmatprep.subr.bf16.mxu0 0
      %1086 = vmatpush1.bf16.msra.mxu0 %v1067
      %1087 = vmatprep.subr.bf16.mxu0 0
      %1088 = vmatpush1.bf16.msra.mxu0 %v1068
      %1089 = vmatprep.subr.bf16.mxu0 0
      %1090 = vmatpush1.bf16.msra.mxu0 %v1069
      %1091 = vmatprep.subr.bf16.mxu0 0
      %1092 = vmatpush1.bf16.msra.mxu0 %v1070
      %1093 = vmatprep.subr.bf16.mxu0 0
      %1094 = vmatpush1.bf16.msra.mxu0 %v1071
      %1095 = vmatprep.subr.bf16.mxu0 0
      %1096 = vmatpush1.bf16.msra.mxu0 %v1072
      %1097 = vmatprep.subr.bf16.mxu0 0
      %1098 = vmatpush1.bf16.msra.mxu0 0
      %1099 = vmatprep.subr.bf16.mxu0 0
      %1100 = vmatpush1.bf16.msra.mxu0 0
      %1101 = vmatprep.subr.bf16.mxu0 0
      %1102 = vmatpush1.bf16.msra.mxu0 0
      %1103 = vmatprep.subr.bf16.mxu0 0
      %1104 = vmatpush1.bf16.msra.mxu0 0
      %1105 = vmatprep.subr.bf16.mxu0 0
      %1106 = vmatpush1.bf16.msra.mxu0 0
      %1107 = vmatprep.subr.bf16.mxu0 0
      %1108 = vmatpush1.bf16.msra.mxu0 0
      %1109 = vmatprep.subr.bf16.mxu0 0
      %1110 = vmatpush1.bf16.msra.mxu0 0
      %1111 = vmatprep.subr.bf16.mxu0 0
      %1112 = vmatpush1.bf16.msra.mxu0 0
      %1113 = vmatprep.mubr.bf16.mxu0 0
      %1114 = vmatmul.mubr.bf16.gmra.mrb[0].mxu0 %v1017
      %v1115 = vpop.f32.mrb[0].mxu0
      %v1116 = vadd.f32 0.0, %v1115
      %v1117 = vpop.f32.mrb[0].mxu0
      %v1118 = vpop.f32.mrb[0].mxu0
      %v1119 = vadd.f32 0.0, %v1118
      %v1120 = vpop.f32.mrb[0].mxu0
      %1121 = vmatprep.mubr.bf16.mxu0 0
      %1122 = vmatmul.mubr.bf16.gmra.mrb[0].mxu0 %v1018
      %v1123 = vpop.f32.mrb[0].mxu0
      %v1124 = vadd.f32 0.0, %v1123
      %v1125 = vpop.f32.mrb[0].mxu0
      %v1126 = vpop.f32.mrb[0].mxu0
      %v1127 = vadd.f32 0.0, %v1126
      %v1128 = vpop.f32.mrb[0].mxu0
      %1129 = vmatprep.mubr.bf16.mxu0 0
      %1130 = vmatmul.mubr.bf16.gmra.mrb[0].mxu0 %v1019
      %v1131 = vpop.f32.mrb[0].mxu0
      %v1132 = vadd.f32 0.0, %v1131
      %v1133 = vpop.f32.mrb[0].mxu0
      %v1134 = vpop.f32.mrb[0].mxu0
      %v1135 = vadd.f32 0.0, %v1134
      %v1136 = vpop.f32.mrb[0].mxu0
      %1137 = vmatprep.mubr.bf16.mxu0 0
      %1138 = vmatmul.mubr.bf16.gmra.mrb[0].mxu0 %v1020
      %v1139 = vpop.f32.mrb[0].mxu0
      %v1140 = vadd.f32 0.0, %v1139
      %v1141 = vpop.f32.mrb[0].mxu0
      %v1142 = vpop.f32.mrb[0].mxu0
      %v1143 = vadd.f32 0.0, %v1142
      %v1144 = vpop.f32.mrb[0].mxu0
      %1145 = vmatprep.mubr.bf16.mxu0 0
      %1146 = vmatmul.mubr.bf16.gmra.mrb[0].mxu0 %v1021
      %v1147 = vpop.f32.mrb[0].mxu0
      %v1148 = vadd.f32 0.0, %v1147
      %v1149 = vpop.f32.mrb[0].mxu0
      %v1150 = vpop.f32.mrb[0].mxu0
      %v1151 = vadd.f32 0.0, %v1150
      %v1152 = vpop.f32.mrb[0].mxu0
      %1153 = vmatprep.mubr.bf16.mxu0 0
      %1154 = vmatmul.mubr.bf16.gmra.mrb[0].mxu0 %v1022
      %v1155 = vpop.f32.mrb[0].mxu0
      %v1156 = vadd.f32 0.0, %v1155
      %v1157 = vpop.f32.mrb[0].mxu0
      %v1158 = vpop.f32.mrb[0].mxu0
      %v1159 = vadd.f32 0.0, %v1158
      %v1160 = vpop.f32.mrb[0].mxu0
      %1161 = vmatprep.mubr.bf16.mxu0 0
      %1162 = vmatmul.mubr.bf16.gmra.mrb[0].mxu0 %v1023
      %v1163 = vpop.f32.mrb[0].mxu0
      %v1164 = vadd.f32 0.0, %v1163
      %v1165 = vpop.f32.mrb[0].mxu0
      %v1166 = vpop.f32.mrb[0].mxu0
      %v1167 = vadd.f32 0.0, %v1166
      %v1168 = vpop.f32.mrb[0].mxu0
      %1169 = vmatprep.mubr.bf16.mxu0 0
      %1170 = vmatmul.mubr.bf16.gmra.mrb[0].mxu0 %v1024
      %v1171 = vpop.f32.mrb[0].mxu0
      %v1172 = vadd.f32 0.0, %v1171
      %v1173 = vpop.f32.mrb[0].mxu0
      %v1174 = vpop.f32.mrb[0].mxu0
      %v1175 = vadd.f32 0.0, %v1174
      %v1176 = vpop.f32.mrb[0].mxu0
      %1177 = vmatprep.mubr.bf16.mxu0 0
      %1178 = vmatmul.mubr.bf16.gmra.mrb[0].mxu0 %v1025
      %v1179 = vpop.f32.mrb[0].mxu0
      %v1180 = vadd.f32 0.0, %v1179
      %v1181 = vpop.f32.mrb[0].mxu0
      %v1182 = vpop.f32.mrb[0].mxu0
      %v1183 = vadd.f32 0.0, %v1182
      %v1184 = vpop.f32.mrb[0].mxu0
      %1185 = vmatprep.mubr.bf16.mxu0 0
      %1186 = vmatmul.mubr.bf16.gmra.mrb[0].mxu0 %v1026
      %v1187 = vpop.f32.mrb[0].mxu0
      %v1188 = vadd.f32 0.0, %v1187
      %v1189 = vpop.f32.mrb[0].mxu0
      %v1190 = vpop.f32.mrb[0].mxu0
      %v1191 = vadd.f32 0.0, %v1190
      %v1192 = vpop.f32.mrb[0].mxu0
      %1193 = vmatprep.mubr.bf16.mxu0 0
      %1194 = vmatmul.mubr.bf16.gmra.mrb[0].mxu0 %v1027
      %v1195 = vpop.f32.mrb[0].mxu0
      %v1196 = vadd.f32 0.0, %v1195
      %v1197 = vpop.f32.mrb[0].mxu0
      %v1198 = vpop.f32.mrb[0].mxu0
      %v1199 = vadd.f32 0.0, %v1198
      %v1200 = vpop.f32.mrb[0].mxu0
      %1201 = vmatprep.mubr.bf16.mxu0 0
      %1202 = vmatmul.mubr.bf16.gmra.mrb[0].mxu0 %v1028
      %v1203 = vpop.f32.mrb[0].mxu0
      %v1204 = vadd.f32 0.0, %v1203
      %v1205 = vpop.f32.mrb[0].mxu0
      %v1206 = vpop.f32.mrb[0].mxu0
      %v1207 = vadd.f32 0.0, %v1206
      %v1208 = vpop.f32.mrb[0].mxu0
      %1209 = vmatprep.mubr.bf16.mxu0 0
      %1210 = vmatmul.mubr.bf16.gmra.mrb[0].mxu0 %v1029
      %v1211 = vpop.f32.mrb[0].mxu0
      %v1212 = vadd.f32 0.0, %v1211
      %v1213 = vpop.f32.mrb[0].mxu0
      %v1214 = vpop.f32.mrb[0].mxu0
      %v1215 = vadd.f32 0.0, %v1214
      %v1216 = vpop.f32.mrb[0].mxu0
      %1217 = vmatprep.mubr.bf16.mxu0 0
      %1218 = vmatmul.mubr.bf16.gmra.mrb[0].mxu0 %v1030
      %v1219 = vpop.f32.mrb[0].mxu0
      %v1220 = vadd.f32 0.0, %v1219
      %v1221 = vpop.f32.mrb[0].mxu0
      %v1222 = vpop.f32.mrb[0].mxu0
      %v1223 = vadd.f32 0.0, %v1222
      %v1224 = vpop.f32.mrb[0].mxu0
      %1225 = vmatprep.mubr.bf16.mxu0 0
      %1226 = vmatmul.mubr.bf16.gmra.mrb[0].mxu0 %v1031
      %v1227 = vpop.f32.mrb[0].mxu0
      %v1228 = vadd.f32 0.0, %v1227
      %v1229 = vpop.f32.mrb[0].mxu0
      %v1230 = vpop.f32.mrb[0].mxu0
      %v1231 = vadd.f32 0.0, %v1230
      %v1232 = vpop.f32.mrb[0].mxu0
      %1233 = vmatprep.mubr.bf16.mxu0 0
      %1234 = vmatmul.mubr.bf16.gmra.mrb[0].mxu0 %v1032
      %v1235 = vpop.f32.mrb[0].mxu0
      %v1236 = vadd.f32 0.0, %v1235
      %v1237 = vpop.f32.mrb[0].mxu0
      %v1238 = vpop.f32.mrb[0].mxu0
      %v1239 = vadd.f32 0.0, %v1238
      %v1240 = vpop.f32.mrb[0].mxu0
      %1241 = vdwg.mxu0
      %v1242 = vtanh.pop %v1116
      %v1243 = vtanh.pop %v1119
      %v1244 = vtanh.pop %v1124
      %v1245 = vtanh.pop %v1127
      %v1246 = vtanh.pop %v1132
      %v1247 = vtanh.pop %v1135
      %v1248 = vtanh.pop %v1140
      %v1249 = vtanh.pop %v1143
      %v1250 = vtanh.pop %v1148
      %v1251 = vtanh.pop %v1151
      %v1252 = vtanh.pop %v1156
      %v1253 = vtanh.pop %v1159
      %v1254 = vtanh.pop %v1164
      %v1255 = vtanh.pop %v1167
      %v1256 = vtanh.pop %v1172
      %v1257 = vtanh.pop %v1175
      %v1258 = vtanh.pop %v1180
      %v1259 = vtanh.pop %v1183
      %v1260 = vtanh.pop %v1188
      %v1261 = vtanh.pop %v1191
      %v1262 = vtanh.pop %v1196
      %v1263 = vtanh.pop %v1199
      %v1264 = vtanh.pop %v1204
      %v1265 = vtanh.pop %v1207
      %v1266 = vtanh.pop %v1212
      %v1267 = vtanh.pop %v1215
      %v1268 = vtanh.pop %v1220
      %v1269 = vtanh.pop %v1223
      %v1270 = vtanh.pop %v1228
      %v1271 = vtanh.pop %v1231
      %v1272 = vtanh.pop %v1236
      %v1273 = vtanh.pop %v1239
      %v1274 = vadd.f32 %v1116, 1e-05
      %v1275 = vadd.f32 %v1119, 1e-05
      %v1276 = vadd.f32 %v1124, 1e-05
      %v1277 = vadd.f32 %v1127, 1e-05
      %v1278 = vadd.f32 %v1132, 1e-05
      %v1279 = vadd.f32 %v1135, 1e-05
      %v1280 = vadd.f32 %v1140, 1e-05
      %v1281 = vadd.f32 %v1143, 1e-05
      %v1282 = vadd.f32 %v1148, 1e-05
      %v1283 = vadd.f32 %v1151, 1e-05
      %v1284 = vadd.f32 %v1156, 1e-05
      %v1285 = vadd.f32 %v1159, 1e-05
      %v1286 = vadd.f32 %v1164, 1e-05
      %v1287 = vadd.f32 %v1167, 1e-05
      %v1288 = vadd.f32 %v1172, 1e-05
      %v1289 = vadd.f32 %v1175, 1e-05
      %v1290 = vadd.f32 %v1180, 1e-05
      %v1291 = vadd.f32 %v1183, 1e-05
      %v1292 = vadd.f32 %v1188, 1e-05
      %v1293 = vadd.f32 %v1191, 1e-05
      %v1294 = vadd.f32 %v1196, 1e-05
      %v1295 = vadd.f32 %v1199, 1e-05
      %v1296 = vadd.f32 %v1204, 1e-05
      %v1297 = vadd.f32 %v1207, 1e-05
      %v1298 = vadd.f32 %v1212, 1e-05
      %v1299 = vadd.f32 %v1215, 1e-05
      %v1300 = vadd.f32 %v1220, 1e-05
      %v1301 = vadd.f32 %v1223, 1e-05
      %v1302 = vadd.f32 %v1228, 1e-05
      %v1303 = vadd.f32 %v1231, 1e-05
      %v1304 = vadd.f32 %v1236, 1e-05
      %v1305 = vadd.f32 %v1239, 1e-05
      %v1306 = vxor.u32 %v1274, 2147483648
      %v1307 = vxor.u32 %v1275, 2147483648
      %v1308 = vxor.u32 %v1276, 2147483648
      %v1309 = vxor.u32 %v1277, 2147483648
      %v1310 = vxor.u32 %v1278, 2147483648
      %v1311 = vxor.u32 %v1279, 2147483648
      %v1312 = vxor.u32 %v1280, 2147483648
      %v1313 = vxor.u32 %v1281, 2147483648
      %v1314 = vxor.u32 %v1282, 2147483648
      %v1315 = vxor.u32 %v1283, 2147483648
      %v1316 = vxor.u32 %v1284, 2147483648
      %v1317 = vxor.u32 %v1285, 2147483648
      %v1318 = vxor.u32 %v1286, 2147483648
      %v1319 = vxor.u32 %v1287, 2147483648
      %v1320 = vxor.u32 %v1288, 2147483648
      %v1321 = vxor.u32 %v1289, 2147483648
      %v1322 = vxor.u32 %v1290, 2147483648
      %v1323 = vxor.u32 %v1291, 2147483648
      %v1324 = vxor.u32 %v1292, 2147483648
      %v1325 = vxor.u32 %v1293, 2147483648
      %v1326 = vxor.u32 %v1294, 2147483648
      %v1327 = vxor.u32 %v1295, 2147483648
      %v1328 = vxor.u32 %v1296, 2147483648
      %v1329 = vxor.u32 %v1297, 2147483648
      %v1330 = vxor.u32 %v1298, 2147483648
      %v1331 = vxor.u32 %v1299, 2147483648
      %v1332 = vxor.u32 %v1300, 2147483648
      %v1333 = vxor.u32 %v1301, 2147483648
      %v1334 = vxor.u32 %v1302, 2147483648
      %v1335 = vxor.u32 %v1303, 2147483648
      %v1336 = vxor.u32 %v1304, 2147483648
      %v1337 = vxor.u32 %v1305, 2147483648
      %v1338 = vmul.f32 %v1306, 1.442695
      %v1339 = vpow.pop %v1338
      %v1340 = vmul.f32 %v1307, 1.442695
      %v1341 = vpow.pop %v1340
      %v1342 = vmul.f32 %v1308, 1.442695
      %v1343 = vpow.pop %v1342
      %v1344 = vmul.f32 %v1309, 1.442695
      %v1345 = vpow.pop %v1344
      %v1346 = vmul.f32 %v1310, 1.442695
      %v1347 = vpow.pop %v1346
      %v1348 = vmul.f32 %v1311, 1.442695
      %v1349 = vpow.pop %v1348
      %v1350 = vmul.f32 %v1312, 1.442695
      %v1351 = vpow.pop %v1350
      %v1352 = vmul.f32 %v1313, 1.442695
      %v1353 = vpow.pop %v1352
      %v1354 = vmul.f32 %v1314, 1.442695
      %v1355 = vpow.pop %v1354
      %v1356 = vmul.f32 %v1315, 1.442695
      %v1357 = vpow.pop %v1356
      %v1358 = vmul.f32 %v1316, 1.442695
      %v1359 = vpow.pop %v1358
      %v1360 = vmul.f32 %v1317, 1.442695
      %v1361 = vpow.pop %v1360
      %v1362 = vmul.f32 %v1318, 1.442695
      %v1363 = vpow.pop %v1362
      %v1364 = vmul.f32 %v1319, 1.442695
      %v1365 = vpow.pop %v1364
      %v1366 = vmul.f32 %v1320, 1.442695
      %v1367 = vpow.pop %v1366
      %v1368 = vmul.f32 %v1321, 1.442695
      %v1369 = vpow.pop %v1368
      %v1370 = vmul.f32 %v1322, 1.442695
      %v1371 = vpow.pop %v1370
      %v1372 = vmul.f32 %v1323, 1.442695
      %v1373 = vpow.pop %v1372
      %v1374 = vmul.f32 %v1324, 1.442695
      %v1375 = vpow.pop %v1374
      %v1376 = vmul.f32 %v1325, 1.442695
      %v1377 = vpow.pop %v1376
      %v1378 = vmul.f32 %v1326, 1.442695
      %v1379 = vpow.pop %v1378
      %v1380 = vmul.f32 %v1327, 1.442695
      %v1381 = vpow.pop %v1380
      %v1382 = vmul.f32 %v1328, 1.442695
      %v1383 = vpow.pop %v1382
      %v1384 = vmul.f32 %v1329, 1.442695
      %v1385 = vpow.pop %v1384
      %v1386 = vmul.f32 %v1330, 1.442695
      %v1387 = vpow.pop %v1386
      %v1388 = vmul.f32 %v1331, 1.442695
      %v1389 = vpow.pop %v1388
      %v1390 = vmul.f32 %v1332, 1.442695
      %v1391 = vpow.pop %v1390
      %v1392 = vmul.f32 %v1333, 1.442695
      %v1393 = vpow.pop %v1392
      %v1394 = vmul.f32 %v1334, 1.442695
      %v1395 = vpow.pop %v1394
      %v1396 = vmul.f32 %v1335, 1.442695
      %v1397 = vpow.pop %v1396
      %v1398 = vmul.f32 %v1336, 1.442695
      %v1399 = vpow.pop %v1398
      %v1400 = vmul.f32 %v1337, 1.442695
      %v1401 = vpow.pop %v1400
      %v1402 = vadd.f32 %v1339, 1.0
      %v1403 = vadd.f32 %v1341, 1.0
      %v1404 = vadd.f32 %v1343, 1.0
      %v1405 = vadd.f32 %v1345, 1.0
      %v1406 = vadd.f32 %v1347, 1.0
      %v1407 = vadd.f32 %v1349, 1.0
      %v1408 = vadd.f32 %v1351, 1.0
      %v1409 = vadd.f32 %v1353, 1.0
      %v1410 = vadd.f32 %v1355, 1.0
      %v1411 = vadd.f32 %v1357, 1.0
      %v1412 = vadd.f32 %v1359, 1.0
      %v1413 = vadd.f32 %v1361, 1.0
      %v1414 = vadd.f32 %v1363, 1.0
      %v1415 = vadd.f32 %v1365, 1.0
      %v1416 = vadd.f32 %v1367, 1.0
      %v1417 = vadd.f32 %v1369, 1.0
      %v1418 = vadd.f32 %v1371, 1.0
      %v1419 = vadd.f32 %v1373, 1.0
      %v1420 = vadd.f32 %v1375, 1.0
      %v1421 = vadd.f32 %v1377, 1.0
      %v1422 = vadd.f32 %v1379, 1.0
      %v1423 = vadd.f32 %v1381, 1.0
      %v1424 = vadd.f32 %v1383, 1.0
      %v1425 = vadd.f32 %v1385, 1.0
      %v1426 = vadd.f32 %v1387, 1.0
      %v1427 = vadd.f32 %v1389, 1.0
      %v1428 = vadd.f32 %v1391, 1.0
      %v1429 = vadd.f32 %v1393, 1.0
      %v1430 = vadd.f32 %v1395, 1.0
      %v1431 = vadd.f32 %v1397, 1.0
      %v1432 = vadd.f32 %v1399, 1.0
      %v1433 = vadd.f32 %v1401, 1.0
      %v1434 = vrcp.pop %v1402
      %v1435 = vmul.f32 1.0, %v1434
      %v1436 = vrcp.pop %v1403
      %v1437 = vmul.f32 1.0, %v1436
      %v1438 = vrcp.pop %v1404
      %v1439 = vmul.f32 1.0, %v1438
      %v1440 = vrcp.pop %v1405
      %v1441 = vmul.f32 1.0, %v1440
      %v1442 = vrcp.pop %v1406
      %v1443 = vmul.f32 1.0, %v1442
      %v1444 = vrcp.pop %v1407
      %v1445 = vmul.f32 1.0, %v1444
      %v1446 = vrcp.pop %v1408
      %v1447 = vmul.f32 1.0, %v1446
      %v1448 = vrcp.pop %v1409
      %v1449 = vmul.f32 1.0, %v1448
      %v1450 = vrcp.pop %v1410
      %v1451 = vmul.f32 1.0, %v1450
      %v1452 = vrcp.pop %v1411
      %v1453 = vmul.f32 1.0, %v1452
      %v1454 = vrcp.pop %v1412
      %v1455 = vmul.f32 1.0, %v1454
      %v1456 = vrcp.pop %v1413
      %v1457 = vmul.f32 1.0, %v1456
      %v1458 = vrcp.pop %v1414
      %v1459 = vmul.f32 1.0, %v1458
      %v1460 = vrcp.pop %v1415
      %v1461 = vmul.f32 1.0, %v1460
      %v1462 = vrcp.pop %v1416
      %v1463 = vmul.f32 1.0, %v1462
      %v1464 = vrcp.pop %v1417
      %v1465 = vmul.f32 1.0, %v1464
      %v1466 = vrcp.pop %v1418
      %v1467 = vmul.f32 1.0, %v1466
      %v1468 = vrcp.pop %v1419
      %v1469 = vmul.f32 1.0, %v1468
      %v1470 = vrcp.pop %v1420
      %v1471 = vmul.f32 1.0, %v1470
      %v1472 = vrcp.pop %v1421
      %v1473 = vmul.f32 1.0, %v1472
      %v1474 = vrcp.pop %v1422
      %v1475 = vmul.f32 1.0, %v1474
      %v1476 = vrcp.pop %v1423
      %v1477 = vmul.f32 1.0, %v1476
      %v1478 = vrcp.pop %v1424
      %v1479 = vmul.f32 1.0, %v1478
      %v1480 = vrcp.pop %v1425
      %v1481 = vmul.f32 1.0, %v1480
      %v1482 = vrcp.pop %v1426
      %v1483 = vmul.f32 1.0, %v1482
      %v1484 = vrcp.pop %v1427
      %v1485 = vmul.f32 1.0, %v1484
      %v1486 = vrcp.pop %v1428
      %v1487 = vmul.f32 1.0, %v1486
      %v1488 = vrcp.pop %v1429
      %v1489 = vmul.f32 1.0, %v1488
      %v1490 = vrcp.pop %v1430
      %v1491 = vmul.f32 1.0, %v1490
      %v1492 = vrcp.pop %v1431
      %v1493 = vmul.f32 1.0, %v1492
      %v1494 = vrcp.pop %v1432
      %v1495 = vmul.f32 1.0, %v1494
      %v1496 = vrcp.pop %v1433
      %v1497 = vmul.f32 1.0, %v1496
      %1498 = vrot.lane.b32.xlu0 %v1435, 64
      %v1499 = vpop.permute.xlu0 %1498
      %1500 = vrot.lane.b32.xlu0 %v1437, 64
      %v1501 = vpop.permute.xlu0 %1500
      %1502 = vrot.lane.b32.xlu0 %v1439, 64
      %v1503 = vpop.permute.xlu0 %1502
      %1504 = vrot.lane.b32.xlu0 %v1441, 64
      %v1505 = vpop.permute.xlu0 %1504
      %1506 = vrot.lane.b32.xlu0 %v1443, 64
      %v1507 = vpop.permute.xlu0 %1506
      %1508 = vrot.lane.b32.xlu0 %v1445, 64
      %v1509 = vpop.permute.xlu0 %1508
      %1510 = vrot.lane.b32.xlu0 %v1447, 64
      %v1511 = vpop.permute.xlu0 %1510
      %1512 = vrot.lane.b32.xlu0 %v1449, 64
      %v1513 = vpop.permute.xlu0 %1512
      %1514 = vrot.lane.b32.xlu0 %v1451, 64
      %v1515 = vpop.permute.xlu0 %1514
      %1516 = vrot.lane.b32.xlu0 %v1453, 64
      %v1517 = vpop.permute.xlu0 %1516
      %1518 = vrot.lane.b32.xlu0 %v1455, 64
      %v1519 = vpop.permute.xlu0 %1518
      %1520 = vrot.lane.b32.xlu0 %v1457, 64
      %v1521 = vpop.permute.xlu0 %1520
      %1522 = vrot.lane.b32.xlu0 %v1459, 64
      %v1523 = vpop.permute.xlu0 %1522
      %1524 = vrot.lane.b32.xlu0 %v1461, 64
      %v1525 = vpop.permute.xlu0 %1524
      %1526 = vrot.lane.b32.xlu0 %v1463, 64
      %v1527 = vpop.permute.xlu0 %1526
      %1528 = vrot.lane.b32.xlu0 %v1465, 64
      %v1529 = vpop.permute.xlu0 %1528
      %1530 = vrot.lane.b32.xlu0 %v1467, 64
      %v1531 = vpop.permute.xlu0 %1530
      %1532 = vrot.lane.b32.xlu0 %v1469, 64
      %v1533 = vpop.permute.xlu0 %1532
      %1534 = vrot.lane.b32.xlu0 %v1471, 64
      %v1535 = vpop.permute.xlu0 %1534
      %1536 = vrot.lane.b32.xlu0 %v1473, 64
      %v1537 = vpop.permute.xlu0 %1536
      %1538 = vrot.lane.b32.xlu0 %v1475, 64
      %v1539 = vpop.permute.xlu0 %1538
      %1540 = vrot.lane.b32.xlu0 %v1477, 64
      %v1541 = vpop.permute.xlu0 %1540
      %1542 = vrot.lane.b32.xlu0 %v1479, 64
      %v1543 = vpop.permute.xlu0 %1542
      %1544 = vrot.lane.b32.xlu0 %v1481, 64
      %v1545 = vpop.permute.xlu0 %1544
      %1546 = vrot.lane.b32.xlu0 %v1483, 64
      %v1547 = vpop.permute.xlu0 %1546
      %1548 = vrot.lane.b32.xlu0 %v1485, 64
      %v1549 = vpop.permute.xlu0 %1548
      %1550 = vrot.lane.b32.xlu0 %v1487, 64
      %v1551 = vpop.permute.xlu0 %1550
      %1552 = vrot.lane.b32.xlu0 %v1489, 64
      %v1553 = vpop.permute.xlu0 %1552
      %1554 = vrot.lane.b32.xlu0 %v1491, 64
      %v1555 = vpop.permute.xlu0 %1554
      %1556 = vrot.lane.b32.xlu0 %v1493, 64
      %v1557 = vpop.permute.xlu0 %1556
      %1558 = vrot.lane.b32.xlu0 %v1495, 64
      %v1559 = vpop.permute.xlu0 %1558
      %1560 = vrot.lane.b32.xlu0 %v1497, 64
      %v1561 = vpop.permute.xlu0 %1560
      %1563 = vset.pattern.permute.xlu0 126
      %1564 = vperm.xlu0 %1563, %v150
      %v1565 = vpop.permute.xlu0 %1564
      %1568 = vset.pattern.permute.xlu0 126
      %1569 = vperm.xlu0 %1568, %v151
      %v1570 = vpop.permute.xlu0 %1569
      %1573 = vset.pattern.permute.xlu0 126
      %1574 = vperm.xlu0 %1573, %v152
      %v1575 = vpop.permute.xlu0 %1574
      %1578 = vset.pattern.permute.xlu0 126
      %1579 = vperm.xlu0 %1578, %v153
      %v1580 = vpop.permute.xlu0 %1579
      %1583 = vset.pattern.permute.xlu0 126
      %1584 = vperm.xlu0 %1583, %v154
      %v1585 = vpop.permute.xlu0 %1584
      %1588 = vset.pattern.permute.xlu0 126
      %1589 = vperm.xlu0 %1588, %v155
      %v1590 = vpop.permute.xlu0 %1589
      %1593 = vset.pattern.permute.xlu0 126
      %1594 = vperm.xlu0 %1593, %v156
      %v1595 = vpop.permute.xlu0 %1594
      %1598 = vset.pattern.permute.xlu0 126
      %1599 = vperm.xlu0 %1598, %v157
      %v1600 = vpop.permute.xlu0 %1599
      %1603 = vset.pattern.permute.xlu0 126
      %1604 = vperm.xlu0 %1603, %v158
      %v1605 = vpop.permute.xlu0 %1604
      %1608 = vset.pattern.permute.xlu0 126
      %1609 = vperm.xlu0 %1608, %v159
      %v1610 = vpop.permute.xlu0 %1609
      %1613 = vset.pattern.permute.xlu0 126
      %1614 = vperm.xlu0 %1613, %v160
      %v1615 = vpop.permute.xlu0 %1614
      %1618 = vset.pattern.permute.xlu0 126
      %1619 = vperm.xlu0 %1618, %v161
      %v1620 = vpop.permute.xlu0 %1619
      %1623 = vset.pattern.permute.xlu0 126
      %1624 = vperm.xlu0 %1623, %v162
      %v1625 = vpop.permute.xlu0 %1624
      %1628 = vset.pattern.permute.xlu0 126
      %1629 = vperm.xlu0 %1628, %v163
      %v1630 = vpop.permute.xlu0 %1629
      %1633 = vset.pattern.permute.xlu0 126
      %1634 = vperm.xlu0 %1633, %v164
      %v1635 = vpop.permute.xlu0 %1634
      %1638 = vset.pattern.permute.xlu0 126
      %1639 = vperm.xlu0 %1638, %v165
      %v1640 = vpop.permute.xlu0 %1639
      %1643 = vset.pattern.permute.xlu0 126
      %1644 = vperm.xlu0 %1643, %v166
      %v1645 = vpop.permute.xlu0 %1644
      %1648 = vset.pattern.permute.xlu0 126
      %1649 = vperm.xlu0 %1648, %v167
      %v1650 = vpop.permute.xlu0 %1649
      %1653 = vset.pattern.permute.xlu0 126
      %1654 = vperm.xlu0 %1653, %v168
      %v1655 = vpop.permute.xlu0 %1654
      %1658 = vset.pattern.permute.xlu0 126
      %1659 = vperm.xlu0 %1658, %v169
      %v1660 = vpop.permute.xlu0 %1659
      %1663 = vset.pattern.permute.xlu0 126
      %1664 = vperm.xlu0 %1663, %v170
      %v1665 = vpop.permute.xlu0 %1664
      %1668 = vset.pattern.permute.xlu0 126
      %1669 = vperm.xlu0 %1668, %v171
      %v1670 = vpop.permute.xlu0 %1669
      %1673 = vset.pattern.permute.xlu0 126
      %1674 = vperm.xlu0 %1673, %v172
      %v1675 = vpop.permute.xlu0 %1674
      %1678 = vset.pattern.permute.xlu0 126
      %1679 = vperm.xlu0 %1678, %v173
      %v1680 = vpop.permute.xlu0 %1679
      %1683 = vset.pattern.permute.xlu0 126
      %1684 = vperm.xlu0 %1683, %v174
      %v1685 = vpop.permute.xlu0 %1684
      %1688 = vset.pattern.permute.xlu0 126
      %1689 = vperm.xlu0 %1688, %v175
      %v1690 = vpop.permute.xlu0 %1689
      %1693 = vset.pattern.permute.xlu0 126
      %1694 = vperm.xlu0 %1693, %v176
      %v1695 = vpop.permute.xlu0 %1694
      %1698 = vset.pattern.permute.xlu0 126
      %1699 = vperm.xlu0 %1698, %v177
      %v1700 = vpop.permute.xlu0 %1699
      %1703 = vset.pattern.permute.xlu0 126
      %1704 = vperm.xlu0 %1703, %v178
      %v1705 = vpop.permute.xlu0 %1704
      %1708 = vset.pattern.permute.xlu0 126
      %1709 = vperm.xlu0 %1708, %v179
      %v1710 = vpop.permute.xlu0 %1709
      %1713 = vset.pattern.permute.xlu0 126
      %1714 = vperm.xlu0 %1713, %v180
      %v1715 = vpop.permute.xlu0 %1714
      %1718 = vset.pattern.permute.xlu0 126
      %1719 = vperm.xlu0 %1718, %v181
      %v1720 = vpop.permute.xlu0 %1719
      %v1722 = vmul.f32 %v1499, %v1565
      %v1723 = vmul.f32 %v1501, %v1570
      %v1724 = vmul.f32 %v1503, %v1575
      %v1725 = vmul.f32 %v1505, %v1580
      %v1726 = vmul.f32 %v1507, %v1585
      %v1727 = vmul.f32 %v1509, %v1590
      %v1728 = vmul.f32 %v1511, %v1595
      %v1729 = vmul.f32 %v1513, %v1600
      %v1730 = vmul.f32 %v1515, %v1605
      %v1731 = vmul.f32 %v1517, %v1610
      %v1732 = vmul.f32 %v1519, %v1615
      %v1733 = vmul.f32 %v1521, %v1620
      %v1734 = vmul.f32 %v1523, %v1625
      %v1735 = vmul.f32 %v1525, %v1630
      %v1736 = vmul.f32 %v1527, %v1635
      %v1737 = vmul.f32 %v1529, %v1640
      %v1738 = vmul.f32 %v1531, %v1645
      %v1739 = vmul.f32 %v1533, %v1650
      %v1740 = vmul.f32 %v1535, %v1655
      %v1741 = vmul.f32 %v1537, %v1660
      %v1742 = vmul.f32 %v1539, %v1665
      %v1743 = vmul.f32 %v1541, %v1670
      %v1744 = vmul.f32 %v1543, %v1675
      %v1745 = vmul.f32 %v1545, %v1680
      %v1746 = vmul.f32 %v1547, %v1685
      %v1747 = vmul.f32 %v1549, %v1690
      %v1748 = vmul.f32 %v1551, %v1695
      %v1749 = vmul.f32 %v1553, %v1700
      %v1750 = vmul.f32 %v1555, %v1705
      %v1751 = vmul.f32 %v1557, %v1710
      %v1752 = vmul.f32 %v1559, %v1715
      %v1753 = vmul.f32 %v1561, %v1720
      %v1754 = vadd.f32 %v1242, %v1722
      %v1755 = vadd.f32 %v1243, %v1723
      %v1756 = vadd.f32 %v1244, %v1724
      %v1757 = vadd.f32 %v1245, %v1725
      %v1758 = vadd.f32 %v1246, %v1726
      %v1759 = vadd.f32 %v1247, %v1727
      %v1760 = vadd.f32 %v1248, %v1728
      %v1761 = vadd.f32 %v1249, %v1729
      %v1762 = vadd.f32 %v1250, %v1730
      %v1763 = vadd.f32 %v1251, %v1731
      %v1764 = vadd.f32 %v1252, %v1732
      %v1765 = vadd.f32 %v1253, %v1733
      %v1766 = vadd.f32 %v1254, %v1734
      %v1767 = vadd.f32 %v1255, %v1735
      %v1768 = vadd.f32 %v1256, %v1736
      %v1769 = vadd.f32 %v1257, %v1737
      %v1770 = vadd.f32 %v1258, %v1738
      %v1771 = vadd.f32 %v1259, %v1739
      %v1772 = vadd.f32 %v1260, %v1740
      %v1773 = vadd.f32 %v1261, %v1741
      %v1774 = vadd.f32 %v1262, %v1742
      %v1775 = vadd.f32 %v1263, %v1743
      %v1776 = vadd.f32 %v1264, %v1744
      %v1777 = vadd.f32 %v1265, %v1745
      %v1778 = vadd.f32 %v1266, %v1746
      %v1779 = vadd.f32 %v1267, %v1747
      %v1780 = vadd.f32 %v1268, %v1748
      %v1781 = vadd.f32 %v1269, %v1749
      %v1782 = vadd.f32 %v1270, %v1750
      %v1783 = vadd.f32 %v1271, %v1751
      %v1784 = vadd.f32 %v1272, %v1752
      %v1785 = vadd.f32 %v1273, %v1753
      %v1786 = vmax.f32 %v1754, -1.0
      %v1787 = vmax.f32 %v1755, -1.0
      %v1788 = vmax.f32 %v1756, -1.0
      %v1789 = vmax.f32 %v1757, -1.0
      %v1790 = vmax.f32 %v1758, -1.0
      %v1791 = vmax.f32 %v1759, -1.0
      %v1792 = vmax.f32 %v1760, -1.0
      %v1793 = vmax.f32 %v1761, -1.0
      %v1794 = vmax.f32 %v1762, -1.0
      %v1795 = vmax.f32 %v1763, -1.0
      %v1796 = vmax.f32 %v1764, -1.0
      %v1797 = vmax.f32 %v1765, -1.0
      %v1798 = vmax.f32 %v1766, -1.0
      %v1799 = vmax.f32 %v1767, -1.0
      %v1800 = vmax.f32 %v1768, -1.0
      %v1801 = vmax.f32 %v1769, -1.0
      %v1802 = vmax.f32 %v1770, -1.0
      %v1803 = vmax.f32 %v1771, -1.0
      %v1804 = vmax.f32 %v1772, -1.0
      %v1805 = vmax.f32 %v1773, -1.0
      %v1806 = vmax.f32 %v1774, -1.0
      %v1807 = vmax.f32 %v1775, -1.0
      %v1808 = vmax.f32 %v1776, -1.0
      %v1809 = vmax.f32 %v1777, -1.0
      %v1810 = vmax.f32 %v1778, -1.0
      %v1811 = vmax.f32 %v1779, -1.0
      %v1812 = vmax.f32 %v1780, -1.0
      %v1813 = vmax.f32 %v1781, -1.0
      %v1814 = vmax.f32 %v1782, -1.0
      %v1815 = vmax.f32 %v1783, -1.0
      %v1816 = vmax.f32 %v1784, -1.0
      %v1817 = vmax.f32 %v1785, -1.0
      %v1818 = vmin.f32 %v1786, 1.0
      %v1819 = vmin.f32 %v1787, 1.0
      %v1820 = vmin.f32 %v1788, 1.0
      %v1821 = vmin.f32 %v1789, 1.0
      %v1822 = vmin.f32 %v1790, 1.0
      %v1823 = vmin.f32 %v1791, 1.0
      %v1824 = vmin.f32 %v1792, 1.0
      %v1825 = vmin.f32 %v1793, 1.0
      %v1826 = vmin.f32 %v1794, 1.0
      %v1827 = vmin.f32 %v1795, 1.0
      %v1828 = vmin.f32 %v1796, 1.0
      %v1829 = vmin.f32 %v1797, 1.0
      %v1830 = vmin.f32 %v1798, 1.0
      %v1831 = vmin.f32 %v1799, 1.0
      %v1832 = vmin.f32 %v1800, 1.0
      %v1833 = vmin.f32 %v1801, 1.0
      %v1834 = vmin.f32 %v1802, 1.0
      %v1835 = vmin.f32 %v1803, 1.0
      %v1836 = vmin.f32 %v1804, 1.0
      %v1837 = vmin.f32 %v1805, 1.0
      %v1838 = vmin.f32 %v1806, 1.0
      %v1839 = vmin.f32 %v1807, 1.0
      %v1840 = vmin.f32 %v1808, 1.0
      %v1841 = vmin.f32 %v1809, 1.0
      %v1842 = vmin.f32 %v1810, 1.0
      %v1843 = vmin.f32 %v1811, 1.0
      %v1844 = vmin.f32 %v1812, 1.0
      %v1845 = vmin.f32 %v1813, 1.0
      %v1846 = vmin.f32 %v1814, 1.0
      %v1847 = vmin.f32 %v1815, 1.0
      %v1848 = vmin.f32 %v1816, 1.0
      %v1849 = vmin.f32 %v1817, 1.0
      %1851 = vset.pattern.permute.xlu0 0
      %1852 = vperm.xlu0 %1851, %v1818
      %v1853 = vpop.permute.xlu0 %1852
      %1856 = vset.pattern.permute.xlu0 0
      %1857 = vperm.xlu0 %1856, %v1819
      %v1858 = vpop.permute.xlu0 %1857
      %1861 = vset.pattern.permute.xlu0 0
      %1862 = vperm.xlu0 %1861, %v1820
      %v1863 = vpop.permute.xlu0 %1862
      %1866 = vset.pattern.permute.xlu0 0
      %1867 = vperm.xlu0 %1866, %v1821
      %v1868 = vpop.permute.xlu0 %1867
      %1871 = vset.pattern.permute.xlu0 0
      %1872 = vperm.xlu0 %1871, %v1822
      %v1873 = vpop.permute.xlu0 %1872
      %1876 = vset.pattern.permute.xlu0 0
      %1877 = vperm.xlu0 %1876, %v1823
      %v1878 = vpop.permute.xlu0 %1877
      %1881 = vset.pattern.permute.xlu0 0
      %1882 = vperm.xlu0 %1881, %v1824
      %v1883 = vpop.permute.xlu0 %1882
      %1886 = vset.pattern.permute.xlu0 0
      %1887 = vperm.xlu0 %1886, %v1825
      %v1888 = vpop.permute.xlu0 %1887
      %1891 = vset.pattern.permute.xlu0 0
      %1892 = vperm.xlu0 %1891, %v1826
      %v1893 = vpop.permute.xlu0 %1892
      %1896 = vset.pattern.permute.xlu0 0
      %1897 = vperm.xlu0 %1896, %v1827
      %v1898 = vpop.permute.xlu0 %1897
      %1901 = vset.pattern.permute.xlu0 0
      %1902 = vperm.xlu0 %1901, %v1828
      %v1903 = vpop.permute.xlu0 %1902
      %1906 = vset.pattern.permute.xlu0 0
      %1907 = vperm.xlu0 %1906, %v1829
      %v1908 = vpop.permute.xlu0 %1907
      %1911 = vset.pattern.permute.xlu0 0
      %1912 = vperm.xlu0 %1911, %v1830
      %v1913 = vpop.permute.xlu0 %1912
      %1916 = vset.pattern.permute.xlu0 0
      %1917 = vperm.xlu0 %1916, %v1831
      %v1918 = vpop.permute.xlu0 %1917
      %1921 = vset.pattern.permute.xlu0 0
      %1922 = vperm.xlu0 %1921, %v1832
      %v1923 = vpop.permute.xlu0 %1922
      %1926 = vset.pattern.permute.xlu0 0
      %1927 = vperm.xlu0 %1926, %v1833
      %v1928 = vpop.permute.xlu0 %1927
      %1931 = vset.pattern.permute.xlu0 0
      %1932 = vperm.xlu0 %1931, %v1834
      %v1933 = vpop.permute.xlu0 %1932
      %1936 = vset.pattern.permute.xlu0 0
      %1937 = vperm.xlu0 %1936, %v1835
      %v1938 = vpop.permute.xlu0 %1937
      %1941 = vset.pattern.permute.xlu0 0
      %1942 = vperm.xlu0 %1941, %v1836
      %v1943 = vpop.permute.xlu0 %1942
      %1946 = vset.pattern.permute.xlu0 0
      %1947 = vperm.xlu0 %1946, %v1837
      %v1948 = vpop.permute.xlu0 %1947
      %1951 = vset.pattern.permute.xlu0 0
      %1952 = vperm.xlu0 %1951, %v1838
      %v1953 = vpop.permute.xlu0 %1952
      %1956 = vset.pattern.permute.xlu0 0
      %1957 = vperm.xlu0 %1956, %v1839
      %v1958 = vpop.permute.xlu0 %1957
      %1961 = vset.pattern.permute.xlu0 0
      %1962 = vperm.xlu0 %1961, %v1840
      %v1963 = vpop.permute.xlu0 %1962
      %1966 = vset.pattern.permute.xlu0 0
      %1967 = vperm.xlu0 %1966, %v1841
      %v1968 = vpop.permute.xlu0 %1967
      %1971 = vset.pattern.permute.xlu0 0
      %1972 = vperm.xlu0 %1971, %v1842
      %v1973 = vpop.permute.xlu0 %1972
      %1976 = vset.pattern.permute.xlu0 0
      %1977 = vperm.xlu0 %1976, %v1843
      %v1978 = vpop.permute.xlu0 %1977
      %1981 = vset.pattern.permute.xlu0 0
      %1982 = vperm.xlu0 %1981, %v1844
      %v1983 = vpop.permute.xlu0 %1982
      %1986 = vset.pattern.permute.xlu0 0
      %1987 = vperm.xlu0 %1986, %v1845
      %v1988 = vpop.permute.xlu0 %1987
      %1991 = vset.pattern.permute.xlu0 0
      %1992 = vperm.xlu0 %1991, %v1846
      %v1993 = vpop.permute.xlu0 %1992
      %1996 = vset.pattern.permute.xlu0 0
      %1997 = vperm.xlu0 %1996, %v1847
      %v1998 = vpop.permute.xlu0 %1997
      %2001 = vset.pattern.permute.xlu0 0
      %2002 = vperm.xlu0 %2001, %v1848
      %v2003 = vpop.permute.xlu0 %2002
      %2006 = vset.pattern.permute.xlu0 0
      %2007 = vperm.xlu0 %2006, %v1849
      %v2008 = vpop.permute.xlu0 %2007
      %v2010 = vsub.f32 %v1853, %v1242
      %v2011 = vsub.f32 %v1858, %v1243
      %v2012 = vsub.f32 %v1863, %v1244
      %v2013 = vsub.f32 %v1868, %v1245
      %v2014 = vsub.f32 %v1873, %v1246
      %v2015 = vsub.f32 %v1878, %v1247
      %v2016 = vsub.f32 %v1883, %v1248
      %v2017 = vsub.f32 %v1888, %v1249
      %v2018 = vsub.f32 %v1893, %v1250
      %v2019 = vsub.f32 %v1898, %v1251
      %v2020 = vsub.f32 %v1903, %v1252
      %v2021 = vsub.f32 %v1908, %v1253
      %v2022 = vsub.f32 %v1913, %v1254
      %v2023 = vsub.f32 %v1918, %v1255
      %v2024 = vsub.f32 %v1923, %v1256
      %v2025 = vsub.f32 %v1928, %v1257
      %v2026 = vsub.f32 %v1933, %v1258
      %v2027 = vsub.f32 %v1938, %v1259
      %v2028 = vsub.f32 %v1943, %v1260
      %v2029 = vsub.f32 %v1948, %v1261
      %v2030 = vsub.f32 %v1953, %v1262
      %v2031 = vsub.f32 %v1958, %v1263
      %v2032 = vsub.f32 %v1963, %v1264
      %v2033 = vsub.f32 %v1968, %v1265
      %v2034 = vsub.f32 %v1973, %v1266
      %v2035 = vsub.f32 %v1978, %v1267
      %v2036 = vsub.f32 %v1983, %v1268
      %v2037 = vsub.f32 %v1988, %v1269
      %v2038 = vsub.f32 %v1993, %v1270
      %v2039 = vsub.f32 %v1998, %v1271
      %v2040 = vsub.f32 %v2003, %v1272
      %v2041 = vsub.f32 %v2008, %v1273
      %v2042 = vrcp.pop %v1499
      %v2043 = vmul.f32 %v2010, %v2042
      %v2044 = vrcp.pop %v1501
      %v2045 = vmul.f32 %v2011, %v2044
      %v2046 = vrcp.pop %v1503
      %v2047 = vmul.f32 %v2012, %v2046
      %v2048 = vrcp.pop %v1505
      %v2049 = vmul.f32 %v2013, %v2048
      %v2050 = vrcp.pop %v1507
      %v2051 = vmul.f32 %v2014, %v2050
      %v2052 = vrcp.pop %v1509
      %v2053 = vmul.f32 %v2015, %v2052
      %v2054 = vrcp.pop %v1511
      %v2055 = vmul.f32 %v2016, %v2054
      %v2056 = vrcp.pop %v1513
      %v2057 = vmul.f32 %v2017, %v2056
      %v2058 = vrcp.pop %v1515
      %v2059 = vmul.f32 %v2018, %v2058
      %v2060 = vrcp.pop %v1517
      %v2061 = vmul.f32 %v2019, %v2060
      %v2062 = vrcp.pop %v1519
      %v2063 = vmul.f32 %v2020, %v2062
      %v2064 = vrcp.pop %v1521
      %v2065 = vmul.f32 %v2021, %v2064
      %v2066 = vrcp.pop %v1523
      %v2067 = vmul.f32 %v2022, %v2066
      %v2068 = vrcp.pop %v1525
      %v2069 = vmul.f32 %v2023, %v2068
      %v2070 = vrcp.pop %v1527
      %v2071 = vmul.f32 %v2024, %v2070
      %v2072 = vrcp.pop %v1529
      %v2073 = vmul.f32 %v2025, %v2072
      %v2074 = vrcp.pop %v1531
      %v2075 = vmul.f32 %v2026, %v2074
      %v2076 = vrcp.pop %v1533
      %v2077 = vmul.f32 %v2027, %v2076
      %v2078 = vrcp.pop %v1535
      %v2079 = vmul.f32 %v2028, %v2078
      %v2080 = vrcp.pop %v1537
      %v2081 = vmul.f32 %v2029, %v2080
      %v2082 = vrcp.pop %v1539
      %v2083 = vmul.f32 %v2030, %v2082
      %v2084 = vrcp.pop %v1541
      %v2085 = vmul.f32 %v2031, %v2084
      %v2086 = vrcp.pop %v1543
      %v2087 = vmul.f32 %v2032, %v2086
      %v2088 = vrcp.pop %v1545
      %v2089 = vmul.f32 %v2033, %v2088
      %v2090 = vrcp.pop %v1547
      %v2091 = vmul.f32 %v2034, %v2090
      %v2092 = vrcp.pop %v1549
      %v2093 = vmul.f32 %v2035, %v2092
      %v2094 = vrcp.pop %v1551
      %v2095 = vmul.f32 %v2036, %v2094
      %v2096 = vrcp.pop %v1553
      %v2097 = vmul.f32 %v2037, %v2096
      %v2098 = vrcp.pop %v1555
      %v2099 = vmul.f32 %v2038, %v2098
      %v2100 = vrcp.pop %v1557
      %v2101 = vmul.f32 %v2039, %v2100
      %v2102 = vrcp.pop %v1559
      %v2103 = vmul.f32 %v2040, %v2102
      %v2104 = vrcp.pop %v1561
      %v2105 = vmul.f32 %v2041, %v2104
      %v2106 = vmul.f32 %v2043, -0.5
      %v2107 = vmul.f32 %v2045, -0.5
      %v2108 = vmul.f32 %v2047, -0.5
      %v2109 = vmul.f32 %v2049, -0.5
      %v2110 = vmul.f32 %v2051, -0.5
      %v2111 = vmul.f32 %v2053, -0.5
      %v2112 = vmul.f32 %v2055, -0.5
      %v2113 = vmul.f32 %v2057, -0.5
      %v2114 = vmul.f32 %v2059, -0.5
      %v2115 = vmul.f32 %v2061, -0.5
      %v2116 = vmul.f32 %v2063, -0.5
      %v2117 = vmul.f32 %v2065, -0.5
      %v2118 = vmul.f32 %v2067, -0.5
      %v2119 = vmul.f32 %v2069, -0.5
      %v2120 = vmul.f32 %v2071, -0.5
      %v2121 = vmul.f32 %v2073, -0.5
      %v2122 = vmul.f32 %v2075, -0.5
      %v2123 = vmul.f32 %v2077, -0.5
      %v2124 = vmul.f32 %v2079, -0.5
      %v2125 = vmul.f32 %v2081, -0.5
      %v2126 = vmul.f32 %v2083, -0.5
      %v2127 = vmul.f32 %v2085, -0.5
      %v2128 = vmul.f32 %v2087, -0.5
      %v2129 = vmul.f32 %v2089, -0.5
      %v2130 = vmul.f32 %v2091, -0.5
      %v2131 = vmul.f32 %v2093, -0.5
      %v2132 = vmul.f32 %v2095, -0.5
      %v2133 = vmul.f32 %v2097, -0.5
      %v2134 = vmul.f32 %v2099, -0.5
      %v2135 = vmul.f32 %v2101, -0.5
      %v2136 = vmul.f32 %v2103, -0.5
      %v2137 = vmul.f32 %v2105, -0.5
      %v2138 = vmul.f32 %v2106, %v2043
      %v2139 = vmul.f32 %v2107, %v2045
      %v2140 = vmul.f32 %v2108, %v2047
      %v2141 = vmul.f32 %v2109, %v2049
      %v2142 = vmul.f32 %v2110, %v2051
      %v2143 = vmul.f32 %v2111, %v2053
      %v2144 = vmul.f32 %v2112, %v2055
      %v2145 = vmul.f32 %v2113, %v2057
      %v2146 = vmul.f32 %v2114, %v2059
      %v2147 = vmul.f32 %v2115, %v2061
      %v2148 = vmul.f32 %v2116, %v2063
      %v2149 = vmul.f32 %v2117, %v2065
      %v2150 = vmul.f32 %v2118, %v2067
      %v2151 = vmul.f32 %v2119, %v2069
      %v2152 = vmul.f32 %v2120, %v2071
      %v2153 = vmul.f32 %v2121, %v2073
      %v2154 = vmul.f32 %v2122, %v2075
      %v2155 = vmul.f32 %v2123, %v2077
      %v2156 = vmul.f32 %v2124, %v2079
      %v2157 = vmul.f32 %v2125, %v2081
      %v2158 = vmul.f32 %v2126, %v2083
      %v2159 = vmul.f32 %v2127, %v2085
      %v2160 = vmul.f32 %v2128, %v2087
      %v2161 = vmul.f32 %v2129, %v2089
      %v2162 = vmul.f32 %v2130, %v2091
      %v2163 = vmul.f32 %v2131, %v2093
      %v2164 = vmul.f32 %v2132, %v2095
      %v2165 = vmul.f32 %v2133, %v2097
      %v2166 = vmul.f32 %v2134, %v2099
      %v2167 = vmul.f32 %v2135, %v2101
      %v2168 = vmul.f32 %v2136, %v2103
      %v2169 = vmul.f32 %v2137, %v2105
      %v2170 = vlog2.pop %v1499
      %v2171 = vmul.f32 %v2170, 0.6931472
      %v2172 = vlog2.pop %v1501
      %v2173 = vmul.f32 %v2172, 0.6931472
      %v2174 = vlog2.pop %v1503
      %v2175 = vmul.f32 %v2174, 0.6931472
      %v2176 = vlog2.pop %v1505
      %v2177 = vmul.f32 %v2176, 0.6931472
      %v2178 = vlog2.pop %v1507
      %v2179 = vmul.f32 %v2178, 0.6931472
      %v2180 = vlog2.pop %v1509
      %v2181 = vmul.f32 %v2180, 0.6931472
      %v2182 = vlog2.pop %v1511
      %v2183 = vmul.f32 %v2182, 0.6931472
      %v2184 = vlog2.pop %v1513
      %v2185 = vmul.f32 %v2184, 0.6931472
      %v2186 = vlog2.pop %v1515
      %v2187 = vmul.f32 %v2186, 0.6931472
      %v2188 = vlog2.pop %v1517
      %v2189 = vmul.f32 %v2188, 0.6931472
      %v2190 = vlog2.pop %v1519
      %v2191 = vmul.f32 %v2190, 0.6931472
      %v2192 = vlog2.pop %v1521
      %v2193 = vmul.f32 %v2192, 0.6931472
      %v2194 = vlog2.pop %v1523
      %v2195 = vmul.f32 %v2194, 0.6931472
      %v2196 = vlog2.pop %v1525
      %v2197 = vmul.f32 %v2196, 0.6931472
      %v2198 = vlog2.pop %v1527
      %v2199 = vmul.f32 %v2198, 0.6931472
      %v2200 = vlog2.pop %v1529
      %v2201 = vmul.f32 %v2200, 0.6931472
      %v2202 = vlog2.pop %v1531
      %v2203 = vmul.f32 %v2202, 0.6931472
      %v2204 = vlog2.pop %v1533
      %v2205 = vmul.f32 %v2204, 0.6931472
      %v2206 = vlog2.pop %v1535
      %v2207 = vmul.f32 %v2206, 0.6931472
      %v2208 = vlog2.pop %v1537
      %v2209 = vmul.f32 %v2208, 0.6931472
      %v2210 = vlog2.pop %v1539
      %v2211 = vmul.f32 %v2210, 0.6931472
      %v2212 = vlog2.pop %v1541
      %v2213 = vmul.f32 %v2212, 0.6931472
      %v2214 = vlog2.pop %v1543
      %v2215 = vmul.f32 %v2214, 0.6931472
      %v2216 = vlog2.pop %v1545
      %v2217 = vmul.f32 %v2216, 0.6931472
      %v2218 = vlog2.pop %v1547
      %v2219 = vmul.f32 %v2218, 0.6931472
      %v2220 = vlog2.pop %v1549
      %v2221 = vmul.f32 %v2220, 0.6931472
      %v2222 = vlog2.pop %v1551
      %v2223 = vmul.f32 %v2222, 0.6931472
      %v2224 = vlog2.pop %v1553
      %v2225 = vmul.f32 %v2224, 0.6931472
      %v2226 = vlog2.pop %v1555
      %v2227 = vmul.f32 %v2226, 0.6931472
      %v2228 = vlog2.pop %v1557
      %v2229 = vmul.f32 %v2228, 0.6931472
      %v2230 = vlog2.pop %v1559
      %v2231 = vmul.f32 %v2230, 0.6931472
      %v2232 = vlog2.pop %v1561
      %v2233 = vmul.f32 %v2232, 0.6931472
      %v2234 = vsub.f32 %v2138, %v2171
      %v2235 = vsub.f32 %v2139, %v2173
      %v2236 = vsub.f32 %v2140, %v2175
      %v2237 = vsub.f32 %v2141, %v2177
      %v2238 = vsub.f32 %v2142, %v2179
      %v2239 = vsub.f32 %v2143, %v2181
      %v2240 = vsub.f32 %v2144, %v2183
      %v2241 = vsub.f32 %v2145, %v2185
      %v2242 = vsub.f32 %v2146, %v2187
      %v2243 = vsub.f32 %v2147, %v2189
      %v2244 = vsub.f32 %v2148, %v2191
      %v2245 = vsub.f32 %v2149, %v2193
      %v2246 = vsub.f32 %v2150, %v2195
      %v2247 = vsub.f32 %v2151, %v2197
      %v2248 = vsub.f32 %v2152, %v2199
      %v2249 = vsub.f32 %v2153, %v2201
      %v2250 = vsub.f32 %v2154, %v2203
      %v2251 = vsub.f32 %v2155, %v2205
      %v2252 = vsub.f32 %v2156, %v2207
      %v2253 = vsub.f32 %v2157, %v2209
      %v2254 = vsub.f32 %v2158, %v2211
      %v2255 = vsub.f32 %v2159, %v2213
      %v2256 = vsub.f32 %v2160, %v2215
      %v2257 = vsub.f32 %v2161, %v2217
      %v2258 = vsub.f32 %v2162, %v2219
      %v2259 = vsub.f32 %v2163, %v2221
      %v2260 = vsub.f32 %v2164, %v2223
      %v2261 = vsub.f32 %v2165, %v2225
      %v2262 = vsub.f32 %v2166, %v2227
      %v2263 = vsub.f32 %v2167, %v2229
      %v2264 = vsub.f32 %v2168, %v2231
      %v2265 = vsub.f32 %v2169, %v2233
      %v2266 = vadd.f32 %v2234, -0.9189385
      %v2267 = vadd.f32 %v2235, -0.9189385
      %v2268 = vadd.f32 %v2236, -0.9189385
      %v2269 = vadd.f32 %v2237, -0.9189385
      %v2270 = vadd.f32 %v2238, -0.9189385
      %v2271 = vadd.f32 %v2239, -0.9189385
      %v2272 = vadd.f32 %v2240, -0.9189385
      %v2273 = vadd.f32 %v2241, -0.9189385
      %v2274 = vadd.f32 %v2242, -0.9189385
      %v2275 = vadd.f32 %v2243, -0.9189385
      %v2276 = vadd.f32 %v2244, -0.9189385
      %v2277 = vadd.f32 %v2245, -0.9189385
      %v2278 = vadd.f32 %v2246, -0.9189385
      %v2279 = vadd.f32 %v2247, -0.9189385
      %v2280 = vadd.f32 %v2248, -0.9189385
      %v2281 = vadd.f32 %v2249, -0.9189385
      %v2282 = vadd.f32 %v2250, -0.9189385
      %v2283 = vadd.f32 %v2251, -0.9189385
      %v2284 = vadd.f32 %v2252, -0.9189385
      %v2285 = vadd.f32 %v2253, -0.9189385
      %v2286 = vadd.f32 %v2254, -0.9189385
      %v2287 = vadd.f32 %v2255, -0.9189385
      %v2288 = vadd.f32 %v2256, -0.9189385
      %v2289 = vadd.f32 %v2257, -0.9189385
      %v2290 = vadd.f32 %v2258, -0.9189385
      %v2291 = vadd.f32 %v2259, -0.9189385
      %v2292 = vadd.f32 %v2260, -0.9189385
      %v2293 = vadd.f32 %v2261, -0.9189385
      %v2294 = vadd.f32 %v2262, -0.9189385
      %v2295 = vadd.f32 %v2263, -0.9189385
      %v2296 = vadd.f32 %v2264, -0.9189385
      %v2297 = vadd.f32 %v2265, -0.9189385
      %2298 = vst [vmem:[%s147] sm:$0xff] %v1242
      %2299 = vst [vmem:[%s147 + $0x20] sm:$0xff] %v1243
      %2300 = vst [vmem:[%s147 + $0x40] sm:$0xff] %v1244
      %2301 = vst [vmem:[%s147 + $0x60] sm:$0xff] %v1245
      %2302 = vst [vmem:[%s147 + $0x80] sm:$0xff] %v1246
      %2303 = vst [vmem:[%s147 + $0xa0] sm:$0xff] %v1247
      %2304 = vst [vmem:[%s147 + $0xc0] sm:$0xff] %v1248
      %2305 = vst [vmem:[%s147 + $0xe0] sm:$0xff] %v1249
      %2306 = vst [vmem:[%s147 + $0x100] sm:$0xff] %v1250
      %2307 = vst [vmem:[%s147 + $0x120] sm:$0xff] %v1251
      %2308 = vst [vmem:[%s147 + $0x140] sm:$0xff] %v1252
      %2309 = vst [vmem:[%s147 + $0x160] sm:$0xff] %v1253
      %2310 = vst [vmem:[%s147 + $0x180] sm:$0xff] %v1254
      %2311 = vst [vmem:[%s147 + $0x1a0] sm:$0xff] %v1255
      %2312 = vst [vmem:[%s147 + $0x1c0] sm:$0xff] %v1256
      %2313 = vst [vmem:[%s147 + $0x1e0] sm:$0xff] %v1257
      %2314 = vst [vmem:[%s147 + $0x200] sm:$0xff] %v1258
      %2315 = vst [vmem:[%s147 + $0x220] sm:$0xff] %v1259
      %2316 = vst [vmem:[%s147 + $0x240] sm:$0xff] %v1260
      %2317 = vst [vmem:[%s147 + $0x260] sm:$0xff] %v1261
      %2318 = vst [vmem:[%s147 + $0x280] sm:$0xff] %v1262
      %2319 = vst [vmem:[%s147 + $0x2a0] sm:$0xff] %v1263
      %2320 = vst [vmem:[%s147 + $0x2c0] sm:$0xff] %v1264
      %2321 = vst [vmem:[%s147 + $0x2e0] sm:$0xff] %v1265
      %2322 = vst [vmem:[%s147 + $0x300] sm:$0xff] %v1266
      %2323 = vst [vmem:[%s147 + $0x320] sm:$0xff] %v1267
      %2324 = vst [vmem:[%s147 + $0x340] sm:$0xff] %v1268
      %2325 = vst [vmem:[%s147 + $0x360] sm:$0xff] %v1269
      %2326 = vst [vmem:[%s147 + $0x380] sm:$0xff] %v1270
      %2327 = vst [vmem:[%s147 + $0x3a0] sm:$0xff] %v1271
      %2328 = vst [vmem:[%s147 + $0x3c0] sm:$0xff] %v1272
      %2329 = vst [vmem:[%s147 + $0x3e0] sm:$0xff] %v1273
      %2330 = vst [vmem:[%s147 + $0x8] sm:$0xff] %v1499
      %2331 = vst [vmem:[%s147 + $0x28] sm:$0xff] %v1501
      %2332 = vst [vmem:[%s147 + $0x48] sm:$0xff] %v1503
      %2333 = vst [vmem:[%s147 + $0x68] sm:$0xff] %v1505
      %2334 = vst [vmem:[%s147 + $0x88] sm:$0xff] %v1507
      %2335 = vst [vmem:[%s147 + $0xa8] sm:$0xff] %v1509
      %2336 = vst [vmem:[%s147 + $0xc8] sm:$0xff] %v1511
      %2337 = vst [vmem:[%s147 + $0xe8] sm:$0xff] %v1513
      %2338 = vst [vmem:[%s147 + $0x108] sm:$0xff] %v1515
      %2339 = vst [vmem:[%s147 + $0x128] sm:$0xff] %v1517
      %2340 = vst [vmem:[%s147 + $0x148] sm:$0xff] %v1519
      %2341 = vst [vmem:[%s147 + $0x168] sm:$0xff] %v1521
      %2342 = vst [vmem:[%s147 + $0x188] sm:$0xff] %v1523
      %2343 = vst [vmem:[%s147 + $0x1a8] sm:$0xff] %v1525
      %2344 = vst [vmem:[%s147 + $0x1c8] sm:$0xff] %v1527
      %2345 = vst [vmem:[%s147 + $0x1e8] sm:$0xff] %v1529
      %2346 = vst [vmem:[%s147 + $0x208] sm:$0xff] %v1531
      %2347 = vst [vmem:[%s147 + $0x228] sm:$0xff] %v1533
      %2348 = vst [vmem:[%s147 + $0x248] sm:$0xff] %v1535
      %2349 = vst [vmem:[%s147 + $0x268] sm:$0xff] %v1537
      %2350 = vst [vmem:[%s147 + $0x288] sm:$0xff] %v1539
      %2351 = vst [vmem:[%s147 + $0x2a8] sm:$0xff] %v1541
      %2352 = vst [vmem:[%s147 + $0x2c8] sm:$0xff] %v1543
      %2353 = vst [vmem:[%s147 + $0x2e8] sm:$0xff] %v1545
      %2354 = vst [vmem:[%s147 + $0x308] sm:$0xff] %v1547
      %2355 = vst [vmem:[%s147 + $0x328] sm:$0xff] %v1549
      %2356 = vst [vmem:[%s147 + $0x348] sm:$0xff] %v1551
      %2357 = vst [vmem:[%s147 + $0x368] sm:$0xff] %v1553
      %2358 = vst [vmem:[%s147 + $0x388] sm:$0xff] %v1555
      %2359 = vst [vmem:[%s147 + $0x3a8] sm:$0xff] %v1557
      %2360 = vst [vmem:[%s147 + $0x3c8] sm:$0xff] %v1559
      %2361 = vst [vmem:[%s147 + $0x3e8] sm:$0xff] %v1561
      %2362 = vst [vmem:[%s147 + $0x10] sm:$0xff] %v1818
      %2363 = vst [vmem:[%s147 + $0x30] sm:$0xff] %v1819
      %2364 = vst [vmem:[%s147 + $0x50] sm:$0xff] %v1820
      %2365 = vst [vmem:[%s147 + $0x70] sm:$0xff] %v1821
      %2366 = vst [vmem:[%s147 + $0x90] sm:$0xff] %v1822
      %2367 = vst [vmem:[%s147 + $0xb0] sm:$0xff] %v1823
      %2368 = vst [vmem:[%s147 + $0xd0] sm:$0xff] %v1824
      %2369 = vst [vmem:[%s147 + $0xf0] sm:$0xff] %v1825
      %2370 = vst [vmem:[%s147 + $0x110] sm:$0xff] %v1826
      %2371 = vst [vmem:[%s147 + $0x130] sm:$0xff] %v1827
      %2372 = vst [vmem:[%s147 + $0x150] sm:$0xff] %v1828
      %2373 = vst [vmem:[%s147 + $0x170] sm:$0xff] %v1829
      %2374 = vst [vmem:[%s147 + $0x190] sm:$0xff] %v1830
      %2375 = vst [vmem:[%s147 + $0x1b0] sm:$0xff] %v1831
      %2376 = vst [vmem:[%s147 + $0x1d0] sm:$0xff] %v1832
      %2377 = vst [vmem:[%s147 + $0x1f0] sm:$0xff] %v1833
      %2378 = vst [vmem:[%s147 + $0x210] sm:$0xff] %v1834
      %2379 = vst [vmem:[%s147 + $0x230] sm:$0xff] %v1835
      %2380 = vst [vmem:[%s147 + $0x250] sm:$0xff] %v1836
      %2381 = vst [vmem:[%s147 + $0x270] sm:$0xff] %v1837
      %2382 = vst [vmem:[%s147 + $0x290] sm:$0xff] %v1838
      %2383 = vst [vmem:[%s147 + $0x2b0] sm:$0xff] %v1839
      %2384 = vst [vmem:[%s147 + $0x2d0] sm:$0xff] %v1840
      %2385 = vst [vmem:[%s147 + $0x2f0] sm:$0xff] %v1841
      %2386 = vst [vmem:[%s147 + $0x310] sm:$0xff] %v1842
      %2387 = vst [vmem:[%s147 + $0x330] sm:$0xff] %v1843
      %2388 = vst [vmem:[%s147 + $0x350] sm:$0xff] %v1844
      %2389 = vst [vmem:[%s147 + $0x370] sm:$0xff] %v1845
      %2390 = vst [vmem:[%s147 + $0x390] sm:$0xff] %v1846
      %2391 = vst [vmem:[%s147 + $0x3b0] sm:$0xff] %v1847
      %2392 = vst [vmem:[%s147 + $0x3d0] sm:$0xff] %v1848
      %2393 = vst [vmem:[%s147 + $0x3f0] sm:$0xff] %v1849
      %2394 = vst [vmem:[%s147 + $0x18] sm:$0xff] %v2266
      %2395 = vst [vmem:[%s147 + $0x38] sm:$0xff] %v2267
      %2396 = vst [vmem:[%s147 + $0x58] sm:$0xff] %v2268
      %2397 = vst [vmem:[%s147 + $0x78] sm:$0xff] %v2269
      %2398 = vst [vmem:[%s147 + $0x98] sm:$0xff] %v2270
      %2399 = vst [vmem:[%s147 + $0xb8] sm:$0xff] %v2271
      %2400 = vst [vmem:[%s147 + $0xd8] sm:$0xff] %v2272
      %2401 = vst [vmem:[%s147 + $0xf8] sm:$0xff] %v2273
      %2402 = vst [vmem:[%s147 + $0x118] sm:$0xff] %v2274
      %2403 = vst [vmem:[%s147 + $0x138] sm:$0xff] %v2275
      %2404 = vst [vmem:[%s147 + $0x158] sm:$0xff] %v2276
      %2405 = vst [vmem:[%s147 + $0x178] sm:$0xff] %v2277
      %2406 = vst [vmem:[%s147 + $0x198] sm:$0xff] %v2278
      %2407 = vst [vmem:[%s147 + $0x1b8] sm:$0xff] %v2279
      %2408 = vst [vmem:[%s147 + $0x1d8] sm:$0xff] %v2280
      %2409 = vst [vmem:[%s147 + $0x1f8] sm:$0xff] %v2281
      %2410 = vst [vmem:[%s147 + $0x218] sm:$0xff] %v2282
      %2411 = vst [vmem:[%s147 + $0x238] sm:$0xff] %v2283
      %2412 = vst [vmem:[%s147 + $0x258] sm:$0xff] %v2284
      %2413 = vst [vmem:[%s147 + $0x278] sm:$0xff] %v2285
      %2414 = vst [vmem:[%s147 + $0x298] sm:$0xff] %v2286
      %2415 = vst [vmem:[%s147 + $0x2b8] sm:$0xff] %v2287
      %2416 = vst [vmem:[%s147 + $0x2d8] sm:$0xff] %v2288
      %2417 = vst [vmem:[%s147 + $0x2f8] sm:$0xff] %v2289
      %2418 = vst [vmem:[%s147 + $0x318] sm:$0xff] %v2290
      %2419 = vst [vmem:[%s147 + $0x338] sm:$0xff] %v2291
      %2420 = vst [vmem:[%s147 + $0x358] sm:$0xff] %v2292
      %2421 = vst [vmem:[%s147 + $0x378] sm:$0xff] %v2293
      %2422 = vst [vmem:[%s147 + $0x398] sm:$0xff] %v2294
      %2423 = vst [vmem:[%s147 + $0x3b8] sm:$0xff] %v2295
      %2424 = vst [vmem:[%s147 + $0x3d8] sm:$0xff] %v2296
      %2425 = vst [vmem:[%s147 + $0x3f8] sm:$0xff] %v2297
      %s2426 = smul.u32 32, %s13
      %p2427 = scmp.lt.s32.totalorder %s2426, 63
      %s2428 = scalar_select %p2427, %s2426, 63
      %s2429 = smul.addr %s2428, 4
      %s2430 = smul.addr %s2429, 8
      %s2431 = scalar_lea.vmem %s2, %s2430
      // Predicated region
      $region29: #{action_module_forward.1} parent=27 // pred_check
        %p2432 = pneg %p78
      $region30: #{action_module_forward.1} parent=27 // pred_check_branch
        %2434 = sbr.rel (%p2432) target = $region32
      $region31: #{action_module_forward.1} parent=27 // pred_region
        %s2435 = smul.u32 32, %s13
      $region32: #{action_module_forward.1} parent=27 // pred_fallthru
        _
    $region28: #{action_module_forward.1} parent=5 // pred_fallthru
      _
    %p2436 = scmp.le.s32.totalorder 2, %s8
    // Predicated region
    $region33: #{action_module_forward.1} parent=5 // pred_check
      %p2437 = pneg %p2436
    $region34: #{action_module_forward.1} parent=5 // pred_check_branch
      %2439 = sbr.rel (%p2437) target = $region36
    $region35: #{action_module_forward.1} parent=5 // pred_region
      %s2440 = ssub.s32 %s8, 2
      // Predicated region
      $region37: #{action_module_forward.1} parent=35 // pred_check
        %p2441 = pneg %p84
      $region38: #{action_module_forward.1} parent=35 // pred_check_branch
        %2443 = sbr.rel (%p2441) target = $region40
      $region39: #{action_module_forward.1} parent=35 // pred_region
        %s2444 = smul.u32 32, %s14
        %p2445 = scmp.lt.s32.totalorder %s2444, 63
        %s2446 = scalar_select %p2445, %s2444, 63
        %s2447 = smul.addr %s2446, 4
        %s2448 = smul.addr %s2447, 8
        %s2449 = scalar_lea.vmem %s2, %s2448
      $region40: #{action_module_forward.1} parent=35 // pred_fallthru
        _
    $region36: #{action_module_forward.1} parent=5 // pred_fallthru
      _
  $region6: #{action_module_forward.1} parent=0 // loop_footer
    %s12 = sadd.s32 1, %s8
  $region7: #{action_module_forward.1} parent=0 // loop_footer_branch
    %7 = sbr.rel target = $region3
  $region8: #{action_module_forward.1} parent=0 // loop_exit
    _

</llo_original>
